<compile_context>
chip_gen: v7x
topology: tpu7x:2x2x1
jax: 0.10.0
libtpu: 0.0.40
codegen_flags: <defaults>
</compile_context>

<pallas_src>
import functools

import jax
import jax.numpy as jnp
from jax import lax
from jax.experimental import pallas as pl
from jax.experimental.pallas import tpu as pltpu

EPS = 1e-5
LANE = 128                            # channel dims padded to multiples of the TPU lane width
VMEM_LIMIT = 32 * 1024 * 1024         # safe scoped-VMEM request on v5e/v6e/v7x (v7x: 64 MiB total)
CONV_TILE_BUDGET = 20 * 1024 * 1024   # per-pipeline-stage budget used when sizing conv tiles
PATCH_TILE_BYTES = 4 * 1024 * 1024    # per-tile byte target for the im2col fallback path


# ------------------------------ small helpers -------------------------------

def _round_up(v, m):
    return (v + m - 1) // m * m


def _pad_last(a, target):
    pad = target - a.shape[-1]
    if pad == 0:
        return a
    return jnp.pad(a, [(0, 0)] * (a.ndim - 1) + [(0, pad)])


def _fit_rows(a, rows):
    if a.shape[0] == rows:
        return a
    if a.shape[0] > rows:
        return a[:rows]
    return jnp.pad(a, ((0, rows - a.shape[0]), (0, 0)))


def _row_tile_divisor(rows, cap=1024):
    """Largest power-of-two row tile (multiple of 8) that divides `rows`."""
    if rows % 8 != 0:
        return rows
    tm = 8
    while tm * 2 <= cap and rows % (tm * 2) == 0:
        tm *= 2
    return tm


def _compiler_params(semantics):
    return pltpu.CompilerParams(dimension_semantics=semantics,
                                vmem_limit_bytes=VMEM_LIMIT)


# ----------------------------- Pallas kernels --------------------------------

def _matmul_stats(p, w_ref, wd_ref, cinp, y_ref, yd_ref, st_ref):
    """Fused (tm, 9*Cin) x (9*Cin, Cout) MXU matmul (+ optional 1x1 downsample on the centre
    tap) plus per-tile BN partial statistics [sum, sum_sq, ds_sum, ds_sum_sq]."""
    y = jnp.dot(p, w_ref[...], preferred_element_type=jnp.float32)
    y_ref[...] = y
    s = jnp.sum(y, axis=0, keepdims=True)
    ss = jnp.sum(y * y, axis=0, keepdims=True)
    if wd_ref is not None:
        center = p[:, 4 * cinp:5 * cinp]     # tap (dy=1, dx=1): the strided input positions
        yd = jnp.dot(center, wd_ref[...], preferred_element_type=jnp.float32)
        yd_ref[...] = yd
        sd = jnp.sum(yd, axis=0, keepdims=True)
        ssd = jnp.sum(yd * yd, axis=0, keepdims=True)
    else:
        sd = jnp.zeros_like(s)
        ssd = jnp.zeros_like(s)
    st_ref[0:1, :] = s
    st_ref[1:2, :] = ss
    st_ref[2:3, :] = sd
    st_ref[3:4, :] = ssd


def _conv_halo_kernel(*refs, th, wo, cinp, downsample):
    """Stride-1 3x3 conv: builds the 9 taps in VMEM from a halo'd spatial slab (no HBM im2col)."""
    if downsample:
        body_ref, halo_ref, w_ref, wd_ref, y_ref, yd_ref, st_ref = refs
    else:
        body_ref, halo_ref, w_ref, y_ref, st_ref = refs
        wd_ref = yd_ref = None
    slab = jnp.concatenate([body_ref[...], halo_ref[...]], axis=0)     # (th+2, W+2, Cinp) bf16
    taps = [slab[dy:dy + th, dx:dx + wo, :] for dy in range(3) for dx in range(3)]
    p = jnp.concatenate(taps, axis=-1).reshape(th * wo, 9 * cinp)      # (tm, 9*Cinp) bf16
    _matmul_stats(p, w_ref, wd_ref, cinp, y_ref, yd_ref, st_ref)


def _conv_patch_kernel(*refs, cinp, downsample):
    """3x3 conv from pre-fused im2col rows (fallback for strided / odd-width convs)."""
    if downsample:
        p_ref, w_ref, wd_ref, y_ref, yd_ref, st_ref = refs
    else:
        p_ref, w_ref, y_ref, st_ref = refs
        wd_ref = yd_ref = None
    _matmul_stats(p_ref[...], w_ref, wd_ref, cinp, y_ref, yd_ref, st_ref)


def _bn_relu_kernel(y_ref, sc_ref, sh_ref, o_ref):
    o_ref[...] = jnp.maximum(y_ref[...] * sc_ref[...] + sh_ref[...], 0.0).astype(o_ref.dtype)


def _bn_add_relu_ds_kernel(y_ref, sc_ref, sh_ref, yd_ref, scd_ref, shd_ref, o_ref):
    out = (y_ref[...] * sc_ref[...] + sh_ref[...]
           + yd_ref[...] * scd_ref[...] + shd_ref[...])
    o_ref[...] = jnp.maximum(out, 0.0).astype(o_ref.dtype)


def _bn_add_relu_id_kernel(y_ref, sc_ref, sh_ref, xi_ref, o_ref):
    out = y_ref[...] * sc_ref[...] + sh_ref[...] + xi_ref[...]
    o_ref[...] = jnp.maximum(out, 0.0).astype(o_ref.dtype)


# ------------------------------ pallas_call glue ------------------------------

def _pick_halo_rows(ho, wo, cinp, coutp, downsample):
    """Output-row tile height for the halo conv path (None -> use the im2col fallback)."""
    if ho < 2 or wo % 8 != 0:
        return None
    wp = wo + 2
    best = None
    for th in range(2, ho + 1, 2):       # even so the 2-row halo block offset is an integer
        if ho % th or (th * wo) % 8 or th * wo > 4096:
            continue
        tm = th * wo
        n_out = 2 if downsample else 1
        est = (2 * ((th + 2) * wp * cinp * 2 + n_out * tm * coutp * 4 + 4 * coutp * 4)
               + 9 * cinp * coutp * 2 + (cinp * coutp * 2 if downsample else 0)
               + tm * 9 * cinp * 2 + 2 * tm * coutp * 4)
        if est <= CONV_TILE_BUDGET:      # keeps double-buffered tiles inside VMEM_LIMIT (v7x too)
            best = th
    return best


def _conv3x3_halo(x_sp, wf, wdf, th):
    """x_sp: (N, Ho+2, Wo+2, Cinp) bf16, spatially padded.  Returns y (M, Coutp) f32,
    yd (M, Coutp) f32 or None, and per-tile stats (N*T, 4, Coutp) f32."""
    N, Hp, Wp, Cinp = x_sp.shape
    Ho, Wo = Hp - 2, Wp - 2
    T = Ho // th
    tm = th * Wo
    M = N * Ho * Wo
    Coutp = wf.shape[-1]
    ds = wdf is not None
    half = th // 2

    in_specs = [
        pl.BlockSpec((None, th, Wp, Cinp), lambda n, t: (n, t, 0, 0)),            # body rows
        pl.BlockSpec((None, 2, Wp, Cinp), lambda n, t: (n, (t + 1) * half, 0, 0)),  # halo rows
        pl.BlockSpec((9 * Cinp, Coutp), lambda n, t: (0, 0)),                     # fused weights
    ]
    args = [x_sp, x_sp, wf]
    if ds:
        in_specs.append(pl.BlockSpec((Cinp, Coutp), lambda n, t: (0, 0)))
        args.append(wdf)

    out_shape = [jax.ShapeDtypeStruct((M, Coutp), jnp.float32)]
    out_specs = [pl.BlockSpec((tm, Coutp), lambda n, t: (n * T + t, 0))]
    if ds:
        out_shape.append(jax.ShapeDtypeStruct((M, Coutp), jnp.float32))
        out_specs.append(pl.BlockSpec((tm, Coutp), lambda n, t: (n * T + t, 0)))
    out_shape.append(jax.ShapeDtypeStruct((N * T, 4, Coutp), jnp.float32))
    out_specs.append(pl.BlockSpec((None, 4, Coutp), lambda n, t: (n * T + t, 0, 0)))

    kernel = functools.partial(_conv_halo_kernel, th=th, wo=Wo, cinp=Cinp, downsample=ds)
    outs = pl.pallas_call(
        kernel,
        grid=(N, T),
        in_specs=in_specs,
        out_specs=tuple(out_specs),
        out_shape=tuple(out_shape),
        compiler_params=_compiler_params(("parallel", "parallel")),
    )(*args)
    if ds:
        y, yd, st = outs
        return y, yd, st
    y, st = outs
    return y, None, st


def _pick_patch_tile(mo, row_bytes):
    cap = (PATCH_TILE_BYTES // max(row_bytes, 1)) // 8 * 8
    cap = max(8, min(1024, cap))
    if mo >= cap:
        return cap
    return _round_up(mo, 8)


def _conv3x3_patches(P, wf, wdf):
    """P: (Mo, 9*Cinp) bf16 fused im2col rows.  Returns y, yd-or-None, per-tile stats."""
    Mo, K = P.shape
    Coutp = wf.shape[-1]
    Cinp = K // 9
    ds = wdf is not None
    tm = _pick_patch_tile(Mo, K * 2 + (2 if ds else 1) * Coutp * 4)
    Mp = _round_up(Mo, tm)
    if Mp != Mo:
        P = jnp.pad(P, ((0, Mp - Mo), (0, 0)))    # zero rows contribute 0 to the BN sums
    G = Mp // tm

    in_specs = [pl.BlockSpec((tm, K), lambda i: (i, 0)),
                pl.BlockSpec((K, Coutp), lambda i: (0, 0))]
    args = [P, wf]
    if ds:
        in_specs.append(pl.BlockSpec((Cinp, Coutp), lambda i: (0, 0)))
        args.append(wdf)

    out_shape = [jax.ShapeDtypeStruct((Mp, Coutp), jnp.float32)]
    out_specs = [pl.BlockSpec((tm, Coutp), lambda i: (i, 0))]
    if ds:
        out_shape.append(jax.ShapeDtypeStruct((Mp, Coutp), jnp.float32))
        out_specs.append(pl.BlockSpec((tm, Coutp), lambda i: (i, 0)))
    out_shape.append(jax.ShapeDtypeStruct((G, 4, Coutp), jnp.float32))
    out_specs.append(pl.BlockSpec((None, 4, Coutp), lambda i: (i, 0, 0)))

    kernel = functools.partial(_conv_patch_kernel, cinp=Cinp, downsample=ds)
    outs = pl.pallas_call(
        kernel,
        grid=(G,),
        in_specs=in_specs,
        out_specs=tuple(out_specs),
        out_shape=tuple(out_shape),
        compiler_params=_compiler_params(("parallel",)),
    )(*args)
    if ds:
        y, yd, st = outs
        return y, yd, st
    y, st = outs
    return y, None, st


def _bn_relu(y, scale, shift):
    rows, Cp = y.shape
    tm = _row_tile_divisor(rows)
    big = pl.BlockSpec((tm, Cp), lambda i: (i, 0))
    vec = pl.BlockSpec((1, Cp), lambda i: (0, 0))
    return pl.pallas_call(
        _bn_relu_kernel,
        grid=(rows // tm,),
        in_specs=[big, vec, vec],
        out_specs=big,
        out_shape=jax.ShapeDtypeStruct((rows, Cp), jnp.bfloat16),   # feeds conv2's MXU
        compiler_params=_compiler_params(("parallel",)),
    )(y, scale, shift)


def _bn_add_relu(y2, scale2, shift2, identity, scaled=None, shiftd=None):
    rows, Cp = y2.shape
    tm = _row_tile_divisor(rows)
    big = pl.BlockSpec((tm, Cp), lambda i: (i, 0))
    vec = pl.BlockSpec((1, Cp), lambda i: (0, 0))
    if scaled is not None:
        kernel = _bn_add_relu_ds_kernel
        in_specs = [big, vec, vec, big, vec, vec]
        args = (y2, scale2, shift2, identity, scaled, shiftd)
    else:
        kernel = _bn_add_relu_id_kernel
        in_specs = [big, vec, vec, big]
        args = (y2, scale2, shift2, identity)
    return pl.pallas_call(
        kernel,
        grid=(rows // tm,),
        in_specs=in_specs,
        out_specs=big,
        out_shape=jax.ShapeDtypeStruct((rows, Cp), jnp.float32),
        compiler_params=_compiler_params(("parallel",)),
    )(*args)


# ------------------------------- JAX wrapper ----------------------------------

def _fuse_w3x3(w, cinp, coutp):
    # (9, Cin, Cout) -> (9*Cinp, Coutp) bf16, tap-major rows to match the kernels' tap layout.
    t, ci, co = w.shape
    wp = jnp.pad(w, ((0, 0), (0, cinp - ci), (0, coutp - co)))
    return wp.reshape(t * cinp, coutp).astype(jnp.bfloat16)


def _pad_w1x1(w, cinp, coutp):
    ci, co = w.shape
    return jnp.pad(w, ((0, cinp - ci), (0, coutp - co))).astype(jnp.bfloat16)


def _bn_affine(s, ss, count, gamma, beta):
    # BN(y) == y*scale + shift, from the global sum / sum-of-squares over all M rows.
    mean = s / count
    var = jnp.maximum(ss / count - mean * mean, 0.0)
    scale = gamma * lax.rsqrt(var + EPS)
    shift = beta - mean * scale
    return scale, shift


def _build_patches(x_b, stride):
    # Fused im2col rows (Mo, 9*C) -- only used for strided / odd-width convs.
    # TODO(synk): this fallback still materializes 9x the activation in HBM for strided convs.
    N, H, W, C = x_b.shape
    Ho = (H - 1) // stride + 1
    Wo = (W - 1) // stride + 1
    xp = jnp.pad(x_b, ((0, 0), (1, 1), (1, 1), (0, 0)))
    taps = []
    for dy in range(3):
        for dx in range(3):
            sl = xp[:, dy:dy + (Ho - 1) * stride + 1:stride,
                    dx:dx + (Wo - 1) * stride + 1:stride, :]
            taps.append(sl.reshape(N * Ho * Wo, C))
    return jnp.concatenate(taps, axis=-1)


def res_basic_block(x_nchw, params, stride=1):
    """Forward of ResBasicBlock. x_nchw: (N, Cin, H, W) -> (N, Cout, Ho, Wo)."""
    x = jnp.transpose(x_nchw, (0, 2, 3, 1)).astype(jnp.float32)   # NCHW -> NHWC
    N, H, W, Cin = x.shape
    Cout = params["w1"].shape[-1]
    use_ds = (stride != 1) or (Cin != Cout)
    if not use_ds:
        assert stride == 1 and Cin == Cout   # plain identity add requires matching shapes

    Cinp = _round_up(Cin, LANE)
    Coutp = _round_up(Cout, LANE)
    Ho = (H - 1) // stride + 1
    Wo = (W - 1) // stride + 1
    Mo = N * Ho * Wo

    w1f = _fuse_w3x3(params["w1"], Cinp, Coutp)
    w2f = _fuse_w3x3(params["w2"], Coutp, Coutp)
    wdf = _pad_w1x1(params["wd"], Cinp, Coutp) if use_ds else None
    g1, b1 = _pad_last(params["g1"], Coutp), _pad_last(params["b1"], Coutp)
    g2, b2 = _pad_last(params["g2"], Coutp), _pad_last(params["b2"], Coutp)

    xb = _pad_last(x, Cinp).astype(jnp.bfloat16)   # bf16 MXU operands, lane-padded channels

    # conv1 (+ fused 1x1 downsample) + per-tile BN statistics
    th1 = _pick_halo_rows(Ho, Wo, Cinp, Coutp, use_ds) if stride == 1 else None
    if th1 is not None:
        y1, yd, st1 = _conv3x3_halo(jnp.pad(xb, ((0, 0), (1, 1), (1, 1), (0, 0))),
                                    w1f, wdf, th1)
    else:
        y1, yd, st1 = _conv3x3_patches(_build_patches(xb, stride), w1f, wdf)

    s1 = jnp.sum(st1, axis=0)                     # (4, Coutp) global sums
    scale1, shift1 = _bn_affine(s1[0:1], s1[1:2], Mo, g1, b1)

    # BN1 + ReLU (global batch statistics); kept in bf16 for conv2
    a1 = _bn_relu(y1, scale1, shift1)[:Mo].reshape(N, Ho, Wo, Coutp)

    # conv2 + per-tile BN statistics
    th2 = _pick_halo_rows(Ho, Wo, Coutp, Coutp, False)
    if th2 is not None:
        y2, _, st2 = _conv3x3_halo(jnp.pad(a1, ((0, 0), (1, 1), (1, 1), (0, 0))),
                                   w2f, None, th2)
    else:
        y2, _, st2 = _conv3x3_patches(_build_patches(a1, 1), w2f, None)
    s2 = jnp.sum(st2, axis=0)
    scale2, shift2 = _bn_affine(s2[0:1], s2[1:2], Mo, g2, b2)

    # BN2 + (identity | downsample-BN) add + ReLU
    rows = y2.shape[0]
    if use_ds:
        gd, bd = _pad_last(params["gd"], Coutp), _pad_last(params["bd"], Coutp)
        scaled, shiftd = _bn_affine(s1[2:3], s1[3:4], Mo, gd, bd)
        out_flat = _bn_add_relu(y2, scale2, shift2, _fit_rows(yd, rows), scaled, shiftd)
    else:
        xi = _pad_last(x, Coutp).reshape(N * H * W, Coutp)
        out_flat = _bn_add_relu(y2, scale2, shift2, _fit_rows(xi, rows))

    out = out_flat[:Mo, :Cout].reshape(N, Ho, Wo, Cout)
    return jnp.transpose(out, (0, 3, 1, 2))       # NHWC -> NCHW


# ----------------------------- pure-JAX reference ------------------------------

def res_basic_block_ref(x_nchw, params, stride=1):
    """Pure-JAX reference.  Conv operands are cast to bf16 (mirroring the kernel's MXU input
    precision, a deliberate re-baselining); accumulation and all BN/ReLU math are f32."""
    x = jnp.transpose(x_nchw, (0, 2, 3, 1)).astype(jnp.float32)
    N, H, W, Cin = x.shape
    Cout = params["w1"].shape[-1]

    def conv3x3(inp, w, s):
        n, h, wdt, c = inp.shape
        ho = (h - 1) // s + 1
        wo = (wdt - 1) // s + 1
        xp = jnp.pad(inp, ((0, 0), (1, 1), (1, 1), (0, 0)))
        taps = []
        for dy in range(3):
            for dx in range(3):
                sl = xp[:, dy:dy + (ho - 1) * s + 1:s, dx:dx + (wo - 1) * s + 1:s, :]
                taps.append(sl.reshape(n * ho * wo, c))
        p = jnp.concatenate(taps, axis=-1).astype(jnp.bfloat16)
        wf = w.reshape(9 * c, -1).astype(jnp.bfloat16)
        return jnp.dot(p, wf, preferred_element_type=jnp.float32), (n, ho, wo)

    def bn(y, g, b):
        m = y.mean(0, keepdims=True)
        v = ((y - m) ** 2).mean(0, keepdims=True)
        return (y - m) * lax.rsqrt(v + EPS) * g + b

    y1, (n, ho, wo) = conv3x3(x, params["w1"], stride)
    a1 = jnp.maximum(bn(y1, params["g1"], params["b1"]), 0.0)
    y2, _ = conv3x3(a1.reshape(n, ho, wo, Cout), params["w2"], 1)
    y2 = bn(y2, params["g2"], params["b2"])
    if stride != 1 or Cin != Cout:
        xi = x[:, ::stride, ::stride, :][:, :ho, :wo, :].reshape(-1, Cin)
        yd = jnp.dot(xi.astype(jnp.bfloat16), params["wd"].astype(jnp.bfloat16),
                     preferred_element_type=jnp.float32)
        idn = bn(yd, params["gd"], params["bd"])
    else:
        idn = x.reshape(-1, Cin)
    out = jnp.maximum(y2 + idn, 0.0).reshape(n, ho, wo, Cout)
    return jnp.transpose(out, (0, 3, 1, 2))


# ----------------------------------- main --------------------------------------

if __name__ == "__main__":
    key = jax.random.PRNGKey(0)

    def make_params(k, cin, cout):
        ks = jax.random.split(k, 9)
        return dict(
            w1=0.1 * jax.random.normal(ks[0], (9, cin, cout), jnp.float32),
            g1=1.0 + 0.1 * jax.random.normal(ks[1], (1, cout), jnp.float32),
            b1=0.1 * jax.random.normal(ks[2], (1, cout), jnp.float32),
            w2=0.1 * jax.random.normal(ks[3], (9, cout, cout), jnp.float32),
            g2=1.0 + 0.1 * jax.random.normal(ks[4], (1, cout), jnp.float32),
            b2=0.1 * jax.random.normal(ks[5], (1, cout), jnp.float32),
            wd=0.1 * jax.random.normal(ks[6], (cin, cout), jnp.float32),
            gd=1.0 + 0.1 * jax.random.normal(ks[7], (1, cout), jnp.float32),
            bd=0.1 * jax.random.normal(ks[8], (1, cout), jnp.float32),
        )

    # (name, N, Cin, Cout, H=W, stride)
    cases = [
        ("downsample_cin_ne_cout", 2, 4, 8, 16, 1),   # Conv1x1+BN downsample path (halo convs)
        ("identity_add", 2, 8, 8, 16, 1),             # plain identity add (halo convs)
        ("strided_downsample", 2, 4, 8, 32, 2),       # stride-2 conv1 (im2col fallback) + halo conv2
    ]
    for name, n, cin, cout, hw, stride in cases:
        key, kx, kp = jax.random.split(key, 3)
        x = jax.random.normal(kx, (n, cin, hw, hw), jnp.float32)
        params = make_params(kp, cin, cout)
        out = jax.block_until_ready(res_basic_block(x, params, stride=stride))
        ref = jax.block_until_ready(res_basic_block_ref(x, params, stride=stride))
        ho = (hw - 1) // stride + 1
        assert out.shape == (n, cout, ho, ho), (name, out.shape)
        err = float(jnp.max(jnp.abs(out - ref)))
        assert jnp.allclose(out, ref, atol=1e-2, rtol=1e-2), (name, err)
    print("KERNEL_OK")
</pallas_src>

<mosaic_0001>
module attributes {stable_mosaic.version = 11 : i64} {
  func.func @_conv_halo_kernel(%arg0: i32, %arg1: i32, %arg2: memref<1x16x18x128xbf16, #tpu.memory_space<vmem>>, %arg3: memref<1x2x18x128xbf16, #tpu.memory_space<vmem>>, %arg4: memref<1152x128xbf16, #tpu.memory_space<vmem>>, %arg5: memref<128x128xbf16, #tpu.memory_space<vmem>>, %arg6: memref<256x128xf32, #tpu.memory_space<vmem>>, %arg7: memref<256x128xf32, #tpu.memory_space<vmem>>, %arg8: memref<1x4x128xf32, #tpu.memory_space<vmem>>) attributes {dimension_semantics = [#tpu.dimension_semantics<parallel>, #tpu.dimension_semantics<parallel>], iteration_bounds = array<i64: 2, 1>, scalar_prefetch = 0 : i64, scratch_operands = 0 : i64, tpu.core_type = #tpu.core_type<tc>, window_params = [{transform_indices = @transform_0, window_bounds = array<i64: 1, 16, 18, 128>}, {transform_indices = @transform_1, window_bounds = array<i64: 1, 2, 18, 128>}, {pipeline_mode = #tpu.pipeline_mode<synchronous>, transform_indices = @transform_2, window_bounds = array<i64: 1152, 128>}, {pipeline_mode = #tpu.pipeline_mode<synchronous>, transform_indices = @transform_3, window_bounds = array<i64: 128, 128>}, {transform_indices = @transform_4, window_bounds = array<i64: 256, 128>}, {transform_indices = @transform_5, window_bounds = array<i64: 256, 128>}, {transform_indices = @transform_6, window_bounds = array<i64: 1, 4, 128>}]} {
    %c0 = arith.constant 0 : index
    %c0_0 = arith.constant 0 : index
    %c0_1 = arith.constant 0 : index
    %c0_2 = arith.constant 0 : index
    %0 = vector.load %arg2[%c0, %c0_0, %c0_1, %c0_2] : memref<1x16x18x128xbf16, #tpu.memory_space<vmem>>, vector<1x16x18x128xbf16>
    %1 = vector.shape_cast %0 : vector<1x16x18x128xbf16> to vector<16x18x128xbf16>
    %c0_3 = arith.constant 0 : index
    %c0_4 = arith.constant 0 : index
    %c0_5 = arith.constant 0 : index
    %c0_6 = arith.constant 0 : index
    %2 = vector.load %arg3[%c0_3, %c0_4, %c0_5, %c0_6] : memref<1x2x18x128xbf16, #tpu.memory_space<vmem>>, vector<1x2x18x128xbf16>
    %3 = vector.shape_cast %2 : vector<1x2x18x128xbf16> to vector<2x18x128xbf16>
    %4 = tpu.concatenate %1, %3 in 0 : vector<16x18x128xbf16>, vector<2x18x128xbf16> -> vector<18x18x128xbf16>
    %5 = vector.extract_strided_slice %4 {offsets = [0, 0, 0], sizes = [16, 16, 128], strides = [1, 1, 1]} : vector<18x18x128xbf16> to vector<16x16x128xbf16>
    %6 = vector.extract_strided_slice %4 {offsets = [0, 1, 0], sizes = [16, 16, 128], strides = [1, 1, 1]} : vector<18x18x128xbf16> to vector<16x16x128xbf16>
    %7 = vector.extract_strided_slice %4 {offsets = [0, 2, 0], sizes = [16, 16, 128], strides = [1, 1, 1]} : vector<18x18x128xbf16> to vector<16x16x128xbf16>
    %8 = vector.extract_strided_slice %4 {offsets = [1, 0, 0], sizes = [16, 16, 128], strides = [1, 1, 1]} : vector<18x18x128xbf16> to vector<16x16x128xbf16>
    %9 = vector.extract_strided_slice %4 {offsets = [1, 1, 0], sizes = [16, 16, 128], strides = [1, 1, 1]} : vector<18x18x128xbf16> to vector<16x16x128xbf16>
    %10 = vector.extract_strided_slice %4 {offsets = [1, 2, 0], sizes = [16, 16, 128], strides = [1, 1, 1]} : vector<18x18x128xbf16> to vector<16x16x128xbf16>
    %11 = vector.extract_strided_slice %4 {offsets = [2, 0, 0], sizes = [16, 16, 128], strides = [1, 1, 1]} : vector<18x18x128xbf16> to vector<16x16x128xbf16>
    %12 = vector.extract_strided_slice %4 {offsets = [2, 1, 0], sizes = [16, 16, 128], strides = [1, 1, 1]} : vector<18x18x128xbf16> to vector<16x16x128xbf16>
    %13 = vector.extract_strided_slice %4 {offsets = [2, 2, 0], sizes = [16, 16, 128], strides = [1, 1, 1]} : vector<18x18x128xbf16> to vector<16x16x128xbf16>
    %14 = tpu.concatenate %5, %6, %7, %8, %9, %10, %11, %12, %13 in 2 : vector<16x16x128xbf16>, vector<16x16x128xbf16>, vector<16x16x128xbf16>, vector<16x16x128xbf16>, vector<16x16x128xbf16>, vector<16x16x128xbf16>, vector<16x16x128xbf16>, vector<16x16x128xbf16>, vector<16x16x128xbf16> -> vector<16x16x1152xbf16>
    %15 = vector.shape_cast %14 : vector<16x16x1152xbf16> to vector<256x1152xbf16>
    %c0_7 = arith.constant 0 : index
    %c0_8 = arith.constant 0 : index
    %16 = vector.load %arg4[%c0_7, %c0_8] : memref<1152x128xbf16, #tpu.memory_space<vmem>>, vector<1152x128xbf16>
    %cst = arith.constant dense<0.000000e+00> : vector<256x128xf32>
    %17 = tpu.matmul %15, %16, %cst {dimension_numbers = #tpu.dot_dimension_numbers<[1], [0], [0], [1], [0, 0, 1, 1], [], []>} : vector<256x1152xbf16>, vector<1152x128xbf16>, vector<256x128xf32> -> vector<256x128xf32>
    %c0_9 = arith.constant 0 : index
    %c0_10 = arith.constant 0 : index
    %18 = vector.load %arg6[%c0_9, %c0_10] : memref<256x128xf32, #tpu.memory_space<vmem>>, vector<256x128xf32>
    tpu.vector_store %arg6[%c0_9, %c0_10], %17 {strides = array<i32>} : memref<256x128xf32, #tpu.memory_space<vmem>>, vector<256x128xf32>,
    %cst_11 = arith.constant dense<0.000000e+00> : vector<128xf32>
    %19 = vector.multi_reduction <add>, %17, %cst_11 [0] : vector<256x128xf32> to vector<128xf32>
    %20 = vector.shape_cast %19 : vector<128xf32> to vector<1x128xf32>
    %21 = arith.mulf %17, %17 : vector<256x128xf32>
    %cst_12 = arith.constant dense<0.000000e+00> : vector<128xf32>
    %22 = vector.multi_reduction <add>, %21, %cst_12 [0] : vector<256x128xf32> to vector<128xf32>
    %23 = vector.shape_cast %22 : vector<128xf32> to vector<1x128xf32>
    %24 = vector.extract_strided_slice %15 {offsets = [0, 512], sizes = [256, 128], strides = [1, 1]} : vector<256x1152xbf16> to vector<256x128xbf16>
    %c0_13 = arith.constant 0 : index
    %c0_14 = arith.constant 0 : index
    %25 = vector.load %arg5[%c0_13, %c0_14] : memref<128x128xbf16, #tpu.memory_space<vmem>>, vector<128x128xbf16>
    %cst_15 = arith.constant dense<0.000000e+00> : vector<256x128xf32>
    %26 = tpu.matmul %24, %25, %cst_15 {dimension_numbers = #tpu.dot_dimension_numbers<[1], [0], [0], [1], [0, 0, 1, 1], [], []>} : vector<256x128xbf16>, vector<128x128xbf16>, vector<256x128xf32> -> vector<256x128xf32>
    %c0_16 = arith.constant 0 : index
    %c0_17 = arith.constant 0 : index
    %27 = vector.load %arg7[%c0_16, %c0_17] : memref<256x128xf32, #tpu.memory_space<vmem>>, vector<256x128xf32>
    tpu.vector_store %arg7[%c0_16, %c0_17], %26 {strides = array<i32>} : memref<256x128xf32, #tpu.memory_space<vmem>>, vector<256x128xf32>,
    %cst_18 = arith.constant dense<0.000000e+00> : vector<128xf32>
    %28 = vector.multi_reduction <add>, %26, %cst_18 [0] : vector<256x128xf32> to vector<128xf32>
    %29 = vector.shape_cast %28 : vector<128xf32> to vector<1x128xf32>
    %30 = arith.mulf %26, %26 : vector<256x128xf32>
    %cst_19 = arith.constant dense<0.000000e+00> : vector<128xf32>
    %31 = vector.multi_reduction <add>, %30, %cst_19 [0] : vector<256x128xf32> to vector<128xf32>
    %32 = vector.shape_cast %31 : vector<128xf32> to vector<1x128xf32>
    %c0_20 = arith.constant 0 : index
    %c0_21 = arith.constant 0 : index
    %c0_22 = arith.constant 0 : index
    %33 = vector.load %arg8[%c0_20, %c0_21, %c0_22] : memref<1x4x128xf32, #tpu.memory_space<vmem>>, vector<1x1x128xf32>
    %34 = vector.shape_cast %33 : vector<1x1x128xf32> to vector<1x128xf32>
    %35 = vector.shape_cast %20 : vector<1x128xf32> to vector<1x1x128xf32>
    tpu.vector_store %arg8[%c0_20, %c0_21, %c0_22], %35 {strides = array<i32>} : memref<1x4x128xf32, #tpu.memory_space<vmem>>, vector<1x1x128xf32>,
    %c0_23 = arith.constant 0 : index
    %c1 = arith.constant 1 : index
    %c0_24 = arith.constant 0 : index
    %36 = vector.load %arg8[%c0_23, %c1, %c0_24] : memref<1x4x128xf32, #tpu.memory_space<vmem>>, vector<1x1x128xf32>
    %37 = vector.shape_cast %36 : vector<1x1x128xf32> to vector<1x128xf32>
    %38 = vector.shape_cast %23 : vector<1x128xf32> to vector<1x1x128xf32>
    tpu.vector_store %arg8[%c0_23, %c1, %c0_24], %38 {strides = array<i32>} : memref<1x4x128xf32, #tpu.memory_space<vmem>>, vector<1x1x128xf32>,
    %c0_25 = arith.constant 0 : index
    %c2 = arith.constant 2 : index
    %c0_26 = arith.constant 0 : index
    %39 = vector.load %arg8[%c0_25, %c2, %c0_26] : memref<1x4x128xf32, #tpu.memory_space<vmem>>, vector<1x1x128xf32>
    %40 = vector.shape_cast %39 : vector<1x1x128xf32> to vector<1x128xf32>
    %41 = vector.shape_cast %29 : vector<1x128xf32> to vector<1x1x128xf32>
    tpu.vector_store %arg8[%c0_25, %c2, %c0_26], %41 {strides = array<i32>} : memref<1x4x128xf32, #tpu.memory_space<vmem>>, vector<1x1x128xf32>,
    %c0_27 = arith.constant 0 : index
    %c3 = arith.constant 3 : index
    %c0_28 = arith.constant 0 : index
    %42 = vector.load %arg8[%c0_27, %c3, %c0_28] : memref<1x4x128xf32, #tpu.memory_space<vmem>>, vector<1x1x128xf32>
    %43 = vector.shape_cast %42 : vector<1x1x128xf32> to vector<1x128xf32>
    %44 = vector.shape_cast %32 : vector<1x128xf32> to vector<1x1x128xf32>
    tpu.vector_store %arg8[%c0_27, %c3, %c0_28], %44 {strides = array<i32>} : memref<1x4x128xf32, #tpu.memory_space<vmem>>, vector<1x1x128xf32>,
    return
  }
  func.func @transform_0(%arg0: i32, %arg1: i32) -> (i32, i32, i32, i32) {
    %c0_i32 = arith.constant 0 : i32
    %c0_i32_0 = arith.constant 0 : i32
    %c0_i32_1 = arith.constant 0 : i32
    return %arg0, %arg1, %c0_i32, %c0_i32_0 : i32, i32, i32, i32
  }
  func.func @transform_1(%arg0: i32, %arg1: i32) -> (i32, i32, i32, i32) {
    %c1_i32 = arith.constant 1 : i32
    %0 = arith.addi %arg1, %c1_i32 : i32
    %c8_i32 = arith.constant 8 : i32
    %1 = arith.muli %0, %c8_i32 : i32
    %c0_i32 = arith.constant 0 : i32
    %c0_i32_0 = arith.constant 0 : i32
    %c0_i32_1 = arith.constant 0 : i32
    return %arg0, %1, %c0_i32, %c0_i32_0 : i32, i32, i32, i32
  }
  func.func @transform_2(%arg0: i32, %arg1: i32) -> (i32, i32) {
    %c0_i32 = arith.constant 0 : i32
    %c0_i32_0 = arith.constant 0 : i32
    %c0_i32_1 = arith.constant 0 : i32
    return %c0_i32, %c0_i32_0 : i32, i32
  }
  func.func @transform_3(%arg0: i32, %arg1: i32) -> (i32, i32) {
    %c0_i32 = arith.constant 0 : i32
    %c0_i32_0 = arith.constant 0 : i32
    %c0_i32_1 = arith.constant 0 : i32
    return %c0_i32, %c0_i32_0 : i32, i32
  }
  func.func @transform_4(%arg0: i32, %arg1: i32) -> (i32, i32) {
    %c1_i32 = arith.constant 1 : i32
    %0 = arith.muli %arg0, %c1_i32 : i32
    %1 = arith.addi %0, %arg1 : i32
    %c0_i32 = arith.constant 0 : i32
    %c0_i32_0 = arith.constant 0 : i32
    return %1, %c0_i32 : i32, i32
  }
  func.func @transform_5(%arg0: i32, %arg1: i32) -> (i32, i32) {
    %c1_i32 = arith.constant 1 : i32
    %0 = arith.muli %arg0, %c1_i32 : i32
    %1 = arith.addi %0, %arg1 : i32
    %c0_i32 = arith.constant 0 : i32
    %c0_i32_0 = arith.constant 0 : i32
    return %1, %c0_i32 : i32, i32
  }
  func.func @transform_6(%arg0: i32, %arg1: i32) -> (i32, i32, i32) {
    %c1_i32 = arith.constant 1 : i32
    %0 = arith.muli %arg0, %c1_i32 : i32
    %1 = arith.addi %0, %arg1 : i32
    %c0_i32 = arith.constant 0 : i32
    %c0_i32_0 = arith.constant 0 : i32
    %c0_i32_1 = arith.constant 0 : i32
    return %1, %c0_i32, %c0_i32_0 : i32, i32, i32
  }
}

</mosaic_0001>

<llo_original>
// kernel: tpu_custom_call.1
$region0: #{tpu_custom_call.1}
  #allocation0 [shape = 'u32[]', space=smem, size = 0x4, offset = 0x4, fixed_abs, tag = 'smem constant byte address 0x4 - core index']
  #allocation1 [shape = 'u32[144,128]{1,0:T(1,128)}', space=vmem, size = 0x12000, scoped, tag = 'internal scratch']
  %s0 = inlined_call_operand.vmem [shape: bf16[2,18,18,128], index: 0, kind: input, shape index: {}]
  %s1 = inlined_call_operand.vmem [shape: bf16[2,18,18,128], index: 1, kind: input, shape index: {}]
  %s2 = inlined_call_operand.vmem [shape: bf16[1152,128], index: 2, kind: input, shape index: {}]
  %s3 = inlined_call_operand.vmem [shape: bf16[128,128], index: 3, kind: input, shape index: {}]
  %s4 = inlined_call_operand.hbm [shape: f32[512,128], index: 4, kind: output, shape index: {0}]
  %s5 = inlined_call_operand.hbm [shape: f32[512,128], index: 5, kind: output, shape index: {1}]
  %s6 = inlined_call_operand.hbm [shape: f32[2,4,128], index: 6, kind: output, shape index: {2}]
  %7 = xla_tuple %s4, %s5, %s6
  %s8 = sld [smem:[#allocation0]]
  $region65: #{tpu_custom_call.1} parent=0
    _
  %s10 = ssub.s32 1, %s8
  %s11 = scalar_select 0, %s10, %s8
  $region1: #{tpu_custom_call.1} parent=0
    #allocation2 [shape = 'u8[262144]{0}', space=vmem, size = 0x40000, scoped, tag = 'output window, operand 0']
    #allocation3 [shape = 's32[2]{0}', space=sflag, size = 0x8, scoped, tag = 'scoped memory for tpu_custom_call.1']
    #allocation4 [shape = 'u8[262144]{0}', space=vmem, size = 0x40000, scoped, tag = 'output window, operand 1']
    #allocation5 [shape = 's32[2]{0}', space=sflag, size = 0x8, scoped, tag = 'scoped memory for tpu_custom_call.1']
    #allocation6 [shape = 'u8[4096]{0}', space=vmem, size = 0x1000, scoped, tag = 'output window, operand 2']
    %12 = vsyncpa [#allocation3], 0
    %s13 = scalar_lea.sflag [#allocation3], 1
    %14 = vsyncpa %s13, 0
    %15 = vsyncpa [#allocation5], 0
    %s16 = scalar_lea.sflag [#allocation5], 1
    %17 = vsyncpa %s16, 0
    loop: start=0, step=1, limit=4
    $region2: #{tpu_custom_call.1} parent=1 // loop_pre_header
      _
    $region3: #{tpu_custom_call.1} parent=1 // loop_header
      %s19 = sphi 0, %s23
      %p20 = scmp.ge.s32.totalorder %s19, 4
      %s26 = sphi 0, %s38
      %s27 = sphi 0, %s34
      %s28 = sphi 0, %s26
      %s29 = sphi 0, %s27
      %s30 = sphi 0, %s28
      %s31 = sphi 0, %s29
      %s43 = sphi 0, %s45
      %s46 = sphi 0, %s43
      %s47 = sphi 0, %s46
      %s63 = sphi 0, %s47
      %s75 = sphi 0, %s77
      %s78 = sphi 0, %s75
      %s79 = sphi 0, %s78
      %s95 = sphi 0, %s79
      %s99 = sphi 0, %s99
      %s101 = sphi 0, %s99
      %s102 = sphi 0, %s101
      %s116 = sphi 0, %s102
      %s120 = sphi 0, %s120
      %s122 = sphi 0, %s120
      %s123 = sphi 0, %s122
      %s137 = sphi 0, %s123
      %s145 = sphi 0, %s147
      %s148 = sphi 0, %s145
      %s149 = sphi 0, %s148
      %s165 = sphi 0, %s149
      %s173 = sphi 0, %s175
      %s176 = sphi 0, %s173
      %s177 = sphi 0, %s176
      %s193 = sphi 0, %s177
      %s201 = sphi 0, %s203
      %s204 = sphi 0, %s201
      %s205 = sphi 0, %s204
      %s221 = sphi 0, %s205
    $region4: #{tpu_custom_call.1} parent=1 // loop_header_branch
      %22 = sbr.rel (%p20) target = $region8
    $region5: #{tpu_custom_call.1} parent=1 // loop_body
      %s24 = ssub.s32 %s19, 1
      %s25 = ssub.s32 %s19, 2
      %s32 = sadd.s32 1, %s27
      %p33 = scmp.ge.s32.totalorder %s32, 1
      %s34 = scalar_select %p33, 0, %s32
      %s35 = sadd.s32 1, %s26
      %s36 = scalar_select %p33, %s35, %s26
      %p37 = scmp.ge.s32.totalorder %s36, 2
      %s38 = scalar_select %p37, 0, %s36
      %s39 = ssub.s32 %s26, %s38
      %s40 = ssub.s32 %s27, %s34
      %s41 = sor.u32 %s39, %s40
      %p42 = scmp.eq.s32.totalorder %s41, 0
      %s44 = sadd.s32 %s43, 1
      %s45 = scalar_select %p42, %s43, %s44
      %p48 = pneg %p42
      %p49 = scmp.eq.s32.totalorder %s19, 1
      %p50 = por %p48, %p49
      %p51 = scmp.ne.s32.totalorder %s43, %s46
      %p52 = scmp.eq.s32.totalorder %s19, 0
      %p53 = por %p51, %p52
      %p54 = scmp.ne.s32.totalorder %s43, %s46
      %p55 = scmp.eq.s32.totalorder %s24, 1
      %p56 = por %p54, %p55
      %p57 = scmp.ne.s32.totalorder %s46, %s47
      %p58 = scmp.eq.s32.totalorder %s24, 0
      %p59 = por %p57, %p58
      %p60 = scmp.ne.s32.totalorder %s46, %s47
      %p61 = scmp.eq.s32.totalorder %s25, 1
      %p62 = por %p60, %p61
      %p64 = scmp.ne.s32.totalorder %s47, %s63
      %p65 = scmp.eq.s32.totalorder %s25, 0
      %p66 = por %p64, %p65
      %s67 = sadd.s32 %s27, 1
      %s68 = smul.u32 %s67, 8
      %s69 = sadd.s32 %s34, 1
      %s70 = smul.u32 %s69, 8
      %s71 = ssub.s32 %s26, %s38
      %s72 = ssub.s32 %s68, %s70
      %s73 = sor.u32 %s71, %s72
      %p74 = scmp.eq.s32.totalorder %s73, 0
      %s76 = sadd.s32 %s75, 1
      %s77 = scalar_select %p74, %s75, %s76
      %p80 = pneg %p74
      %p81 = scmp.eq.s32.totalorder %s19, 1
      %p82 = por %p80, %p81
      %p83 = scmp.ne.s32.totalorder %s75, %s78
      %p84 = scmp.eq.s32.totalorder %s19, 0
      %p85 = por %p83, %p84
      %p86 = scmp.ne.s32.totalorder %s75, %s78
      %p87 = scmp.eq.s32.totalorder %s24, 1
      %p88 = por %p86, %p87
      %p89 = scmp.ne.s32.totalorder %s78, %s79
      %p90 = scmp.eq.s32.totalorder %s24, 0
      %p91 = por %p89, %p90
      %p92 = scmp.ne.s32.totalorder %s78, %s79
      %p93 = scmp.eq.s32.totalorder %s25, 1
      %p94 = por %p92, %p93
      %p96 = scmp.ne.s32.totalorder %s79, %s95
      %p97 = scmp.eq.s32.totalorder %s25, 0
      %p98 = por %p96, %p97
      %s100 = sadd.s32 %s99, 1
      %p103 = scmp.eq.s32.totalorder %s19, 1
      %p104 = scmp.ne.s32.totalorder %s99, %s101
      %p105 = scmp.eq.s32.totalorder %s19, 0
      %p106 = por %p104, %p105
      %p107 = scmp.ne.s32.totalorder %s99, %s101
      %p108 = scmp.eq.s32.totalorder %s24, 1
      %p109 = por %p107, %p108
      %p110 = scmp.ne.s32.totalorder %s101, %s102
      %p111 = scmp.eq.s32.totalorder %s24, 0
      %p112 = por %p110, %p111
      %p113 = scmp.ne.s32.totalorder %s101, %s102
      %p114 = scmp.eq.s32.totalorder %s25, 1
      %p115 = por %p113, %p114
      %p117 = scmp.ne.s32.totalorder %s102, %s116
      %p118 = scmp.eq.s32.totalorder %s25, 0
      %p119 = por %p117, %p118
      %s121 = sadd.s32 %s120, 1
      %p124 = scmp.eq.s32.totalorder %s19, 1
      %p125 = scmp.ne.s32.totalorder %s120, %s122
      %p126 = scmp.eq.s32.totalorder %s19, 0
      %p127 = por %p125, %p126
      %p128 = scmp.ne.s32.totalorder %s120, %s122
      %p129 = scmp.eq.s32.totalorder %s24, 1
      %p130 = por %p128, %p129
      %p131 = scmp.ne.s32.totalorder %s122, %s123
      %p132 = scmp.eq.s32.totalorder %s24, 0
      %p133 = por %p131, %p132
      %p134 = scmp.ne.s32.totalorder %s122, %s123
      %p135 = scmp.eq.s32.totalorder %s25, 1
      %p136 = por %p134, %p135
      %p138 = scmp.ne.s32.totalorder %s123, %s137
      %p139 = scmp.eq.s32.totalorder %s25, 0
      %p140 = por %p138, %p139
      %s141 = sadd.s32 %s26, %s27
      %s142 = sadd.s32 %s38, %s34
      %s143 = ssub.s32 %s141, %s142
      %p144 = scmp.eq.s32.totalorder %s143, 0
      %s146 = sadd.s32 %s145, 1
      %s147 = scalar_select %p144, %s145, %s146
      %p150 = pneg %p144
      %p151 = scmp.eq.s32.totalorder %s19, 1
      %p152 = por %p150, %p151
      %p153 = scmp.ne.s32.totalorder %s145, %s148
      %p154 = scmp.eq.s32.totalorder %s19, 0
      %p155 = por %p153, %p154
      %p156 = scmp.ne.s32.totalorder %s145, %s148
      %p157 = scmp.eq.s32.totalorder %s24, 1
      %p158 = por %p156, %p157
      %p159 = scmp.ne.s32.totalorder %s148, %s149
      %p160 = scmp.eq.s32.totalorder %s24, 0
      %p161 = por %p159, %p160
      %p162 = scmp.ne.s32.totalorder %s148, %s149
      %p163 = scmp.eq.s32.totalorder %s25, 1
      %p164 = por %p162, %p163
      %p166 = scmp.ne.s32.totalorder %s149, %s165
      %p167 = scmp.eq.s32.totalorder %s25, 0
      %p168 = por %p166, %p167
      %s169 = sadd.s32 %s26, %s27
      %s170 = sadd.s32 %s38, %s34
      %s171 = ssub.s32 %s169, %s170
      %p172 = scmp.eq.s32.totalorder %s171, 0
      %s174 = sadd.s32 %s173, 1
      %s175 = scalar_select %p172, %s173, %s174
      %p178 = pneg %p172
      %p179 = scmp.eq.s32.totalorder %s19, 1
      %p180 = por %p178, %p179
      %p181 = scmp.ne.s32.totalorder %s173, %s176
      %p182 = scmp.eq.s32.totalorder %s19, 0
      %p183 = por %p181, %p182
      %p184 = scmp.ne.s32.totalorder %s173, %s176
      %p185 = scmp.eq.s32.totalorder %s24, 1
      %p186 = por %p184, %p185
      %p187 = scmp.ne.s32.totalorder %s176, %s177
      %p188 = scmp.eq.s32.totalorder %s24, 0
      %p189 = por %p187, %p188
      %p190 = scmp.ne.s32.totalorder %s176, %s177
      %p191 = scmp.eq.s32.totalorder %s25, 1
      %p192 = por %p190, %p191
      %p194 = scmp.ne.s32.totalorder %s177, %s193
      %p195 = scmp.eq.s32.totalorder %s25, 0
      %p196 = por %p194, %p195
      %s197 = sadd.s32 %s26, %s27
      %s198 = sadd.s32 %s38, %s34
      %s199 = ssub.s32 %s197, %s198
      %p200 = scmp.eq.s32.totalorder %s199, 0
      %s202 = sadd.s32 %s201, 1
      %s203 = scalar_select %p200, %s201, %s202
      %p206 = pneg %p200
      %p207 = scmp.eq.s32.totalorder %s19, 1
      %p208 = por %p206, %p207
      %p209 = scmp.ne.s32.totalorder %s201, %s204
      %p210 = scmp.eq.s32.totalorder %s19, 0
      %p211 = por %p209, %p210
      %p212 = scmp.ne.s32.totalorder %s201, %s204
      %p213 = scmp.eq.s32.totalorder %s24, 1
      %p214 = por %p212, %p213
      %p215 = scmp.ne.s32.totalorder %s204, %s205
      %p216 = scmp.eq.s32.totalorder %s24, 0
      %p217 = por %p215, %p216
      %p218 = scmp.ne.s32.totalorder %s204, %s205
      %p219 = scmp.eq.s32.totalorder %s25, 1
      %p220 = por %p218, %p219
      %p222 = scmp.ne.s32.totalorder %s205, %s221
      %p223 = scmp.eq.s32.totalorder %s25, 0
      %p224 = por %p222, %p223
      %p225 = scmp.le.s32.totalorder 1, %s19
      %p226 = scmp.lt.s32.totalorder %s19, 3
      %p227 = pnand %p225, %p226
      %p228 = pneg %p227
      // Predicated region
      $region9: #{tpu_custom_call.1} parent=5 // pred_check
        _
      $region10: #{tpu_custom_call.1} parent=5 // pred_check_branch
        %230 = sbr.rel (%p227) target = $region12
      $region11: #{tpu_custom_call.1} parent=5 // pred_region
        %s231 = ssub.s32 %s19, 1
        // Predicated region
        $region13: #{tpu_custom_call.1} parent=11 // pred_check
          %p232 = pneg %p112
        $region14: #{tpu_custom_call.1} parent=11 // pred_check_branch
          %234 = sbr.rel (%p232) target = $region16
        $region15: #{tpu_custom_call.1} parent=11 // pred_region
          _
        $region16: #{tpu_custom_call.1} parent=11 // pred_fallthru
          _
        // Predicated region
        $region17: #{tpu_custom_call.1} parent=11 // pred_check
          %p235 = pneg %p133
        $region18: #{tpu_custom_call.1} parent=11 // pred_check_branch
          %237 = sbr.rel (%p235) target = $region20
        $region19: #{tpu_custom_call.1} parent=11 // pred_region
          _
        $region20: #{tpu_custom_call.1} parent=11 // pred_fallthru
          _
      $region12: #{tpu_custom_call.1} parent=5 // pred_fallthru
        _
      %p238 = scmp.lt.s32.totalorder %s19, 2
      // Predicated region
      $region21: #{tpu_custom_call.1} parent=5 // pred_check
        %p239 = pneg %p238
      $region22: #{tpu_custom_call.1} parent=5 // pred_check_branch
        %241 = sbr.rel (%p239) target = $region24
      $region23: #{tpu_custom_call.1} parent=5 // pred_region
        // Predicated region
        $region25: #{tpu_custom_call.1} parent=23 // pred_check
          %p242 = pneg %p53
        $region26: #{tpu_custom_call.1} parent=23 // pred_check_branch
          %244 = sbr.rel (%p242) target = $region28
        $region27: #{tpu_custom_call.1} parent=23 // pred_region
          %s245 = smul.u32 16, %s27
          %s246 = ssub.s32 18, %s245
          %p247 = scmp.lt.s32.totalorder %s246, 16
          %s248 = scalar_select %p247, %s246, 16
          %s249 = smul.u32 64, %s248
          %s250 = smul.u32 %s249, 3
          %p251 = scmp.lt.s32.totalorder %s26, 1
          %s252 = scalar_select %p251, %s26, 1
          %p253 = scmp.lt.s32.totalorder %s245, 17
          %s254 = scalar_select %p253, %s245, 17
          %s255 = smul.addr %s254, 3
          %s256 = smul.addr %s252, 54
          %s257 = sadd.s32 %s255, %s256
          %s258 = smul.addr %s257, 4
          %s259 = scalar_lea.vmem %s0, %s258
          %s260 = smul.u32 16, %s27
          %s261 = ssub.s32 18, %s260
          %p262 = scmp.lt.s32.totalorder %s261, 16
          %s263 = scalar_select %p262, %s261, 16
          %s264 = smul.u32 64, %s263
          %s265 = smul.u32 %s264, 3
        $region28: #{tpu_custom_call.1} parent=23 // pred_fallthru
          _
        // Predicated region
        $region29: #{tpu_custom_call.1} parent=23 // pred_check
          %p266 = pneg %p85
        $region30: #{tpu_custom_call.1} parent=23 // pred_check_branch
          %268 = sbr.rel (%p266) target = $region32
        $region31: #{tpu_custom_call.1} parent=23 // pred_region
          %s269 = sadd.s32 %s27, 1
          %s270 = smul.u32 %s269, 8
          %s271 = smul.u32 2, %s270
          %p272 = scmp.lt.s32.totalorder %s26, 1
          %s273 = scalar_select %p272, %s26, 1
          %p274 = scmp.lt.s32.totalorder %s271, 17
          %s275 = scalar_select %p274, %s271, 17
          %s276 = smul.addr %s275, 3
          %s277 = smul.addr %s273, 54
          %s278 = sadd.s32 %s276, %s277
          %s279 = smul.addr %s278, 4
          %s280 = scalar_lea.vmem %s1, %s279
          %s281 = sadd.s32 %s27, 1
          %s282 = smul.u32 %s281, 8
          %s283 = smul.u32 2, %s282
        $region32: #{tpu_custom_call.1} parent=23 // pred_fallthru
          _
      $region24: #{tpu_custom_call.1} parent=5 // pred_fallthru
        _
      %p284 = scmp.le.s32.totalorder 1, %s19
      %p285 = scmp.lt.s32.totalorder %s19, 3
      %p286 = pnand %p284, %p285
      %p287 = pneg %p286
      // Predicated region
      $region33: #{tpu_custom_call.1} parent=5 // pred_check
        _
      $region34: #{tpu_custom_call.1} parent=5 // pred_check_branch
        %289 = sbr.rel (%p286) target = $region36
      $region35: #{tpu_custom_call.1} parent=5 // pred_region
        %s290 = ssub.s32 %s19, 1
        %s291 = smul.u32 16, %s29
        %s292 = ssub.s32 18, %s291
        %p293 = scmp.lt.s32.totalorder %s292, 16
        %s294 = scalar_select %p293, %s292, 16
        %s295 = smul.u32 64, %s294
        %s296 = smul.u32 %s295, 3
        %p297 = scmp.lt.s32.totalorder %s28, 1
        %s298 = scalar_select %p297, %s28, 1
        %p299 = scmp.lt.s32.totalorder %s291, 17
        %s300 = scalar_select %p299, %s291, 17
        %s301 = smul.addr %s300, 3
        %s302 = smul.addr %s298, 54
        %s303 = sadd.s32 %s301, %s302
        %s304 = smul.addr %s303, 4
        %s305 = scalar_lea.vmem %s0, %s304
        %p306 = pneg %p59
        %p307 = pneg %p56
        %s308 = sadd.s32 %s29, 1
        %s309 = smul.u32 %s308, 8
        %s310 = smul.u32 2, %s309
        %p311 = scmp.lt.s32.totalorder %s28, 1
        %s312 = scalar_select %p311, %s28, 1
        %p313 = scmp.lt.s32.totalorder %s310, 17
        %s314 = scalar_select %p313, %s310, 17
        %s315 = smul.addr %s314, 3
        %s316 = smul.addr %s312, 54
        %s317 = sadd.s32 %s315, %s316
        %s318 = smul.addr %s317, 4
        %s319 = scalar_lea.vmem %s1, %s318
        %p320 = pneg %p91
        %p321 = pneg %p88
        %p322 = pneg %p112
        %p323 = pneg %p109
        %p324 = pneg %p133
        %p325 = pneg %p130
        %p326 = pneg %p161
        %p327 = pneg %p158
        %s328 = sand.u32 %s148, 1
        %s329 = scalar_lea.sflag [#allocation3], %s328
        %s330 = sand.u32 %s148, 1
        %s331 = smul.addr %s330, 256
        %s332 = scalar_lea.vmem [#allocation2], %s331
        %p333 = pneg %p189
        %p334 = pneg %p186
        %s335 = sand.u32 %s24, 1
        %s336 = scalar_lea.sflag [#allocation5], %s335
        %s337 = sand.u32 %s176, 1
        %s338 = smul.addr %s337, 256
        %s339 = scalar_lea.vmem [#allocation4], %s338
        %p340 = pneg %p217
        %p341 = pneg %p214
        %s342 = sand.u32 %s24, 1
        %s343 = scalar_lea.sflag [#allocation5], %s342
        %s344 = sand.u32 %s204, 1
        %s345 = smul.addr %s344, 4
        %s346 = scalar_lea.vmem [#allocation6], %s345
        %s347 = smul.u32 16, %s29
        %s348 = ssub.s32 18, %s347
        %p349 = scmp.lt.s32.totalorder %s348, 16
        %s350 = scalar_select %p349, %s348, 16
        %s351 = smul.u32 64, %s350
        %s352 = smul.u32 %s351, 3
        %p353 = scmp.lt.s32.totalorder %s28, 1
        %s354 = scalar_select %p353, %s28, 1
        %p355 = scmp.lt.s32.totalorder %s347, 17
        %s356 = scalar_select %p355, %s347, 17
        %s357 = smul.addr %s356, 3
        %s358 = smul.addr %s354, 54
        %s359 = sadd.s32 %s357, %s358
        %s360 = smul.addr %s359, 4
        %s361 = scalar_lea.vmem %s0, %s360
        %s362 = smul.u32 16, %s29
        %s363 = ssub.s32 18, %s362
        %p364 = scmp.lt.s32.totalorder %s363, 16
        %s365 = scalar_select %p364, %s363, 16
        %s366 = smul.u32 64, %s365
        %s367 = smul.u32 %s366, 3
        %s368 = sadd.s32 %s29, 1
        %s369 = smul.u32 %s368, 8
        %s370 = smul.u32 2, %s369
        %p371 = scmp.lt.s32.totalorder %s28, 1
        %s372 = scalar_select %p371, %s28, 1
        %p373 = scmp.lt.s32.totalorder %s370, 17
        %s374 = scalar_select %p373, %s370, 17
        %s375 = smul.addr %s374, 3
        %s376 = smul.addr %s372, 54
        %s377 = sadd.s32 %s375, %s376
        %s378 = smul.addr %s377, 4
        %s379 = scalar_lea.vmem %s1, %s378
        %s380 = sadd.s32 %s29, 1
        %s381 = smul.u32 %s380, 8
        %s382 = smul.u32 2, %s381
        %s383 = sadd.s32 %s28, %s29
        %s384 = smul.u32 32, %s383
        %s385 = sadd.s32 %s28, %s29
        %s386 = smul.u32 32, %s385
        %s387 = sadd.s32 %s28, %s29
        %v389 = vld [vmem:[%s361] sm:$0xf]
        %v390 = vld [vmem:[%s361 + $0x4] sm:$0xf]
        %v391 = vld [vmem:[%s361 + $0x8] sm:$0x1]
        %v392 = vld [vmem:[%s361 + $0xc] sm:$0xf]
        %v393 = vld [vmem:[%s361 + $0x10] sm:$0xf]
        %v394 = vld [vmem:[%s361 + $0x14] sm:$0x1]
        %v395 = vld [vmem:[%s361 + $0x18] sm:$0xf]
        %v396 = vld [vmem:[%s361 + $0x1c] sm:$0xf]
        %v397 = vld [vmem:[%s361 + $0x20] sm:$0x1]
        %v398 = vld [vmem:[%s361 + $0x24] sm:$0xf]
        %v399 = vld [vmem:[%s361 + $0x28] sm:$0xf]
        %v400 = vld [vmem:[%s361 + $0x2c] sm:$0x1]
        %v401 = vld [vmem:[%s361 + $0x30] sm:$0xf]
        %v402 = vld [vmem:[%s361 + $0x34] sm:$0xf]
        %v403 = vld [vmem:[%s361 + $0x38] sm:$0x1]
        %v404 = vld [vmem:[%s361 + $0x3c] sm:$0xf]
        %v405 = vld [vmem:[%s361 + $0x40] sm:$0xf]
        %v406 = vld [vmem:[%s361 + $0x44] sm:$0x1]
        %v407 = vld [vmem:[%s361 + $0x48] sm:$0xf]
        %v408 = vld [vmem:[%s361 + $0x4c] sm:$0xf]
        %v409 = vld [vmem:[%s361 + $0x50] sm:$0x1]
        %v410 = vld [vmem:[%s361 + $0x54] sm:$0xf]
        %v411 = vld [vmem:[%s361 + $0x58] sm:$0xf]
        %v412 = vld [vmem:[%s361 + $0x5c] sm:$0x1]
        %v413 = vld [vmem:[%s361 + $0x60] sm:$0xf]
        %v414 = vld [vmem:[%s361 + $0x64] sm:$0xf]
        %v415 = vld [vmem:[%s361 + $0x68] sm:$0x1]
        %v416 = vld [vmem:[%s361 + $0x6c] sm:$0xf]
        %v417 = vld [vmem:[%s361 + $0x70] sm:$0xf]
        %v418 = vld [vmem:[%s361 + $0x74] sm:$0x1]
        %v419 = vld [vmem:[%s361 + $0x78] sm:$0xf]
        %v420 = vld [vmem:[%s361 + $0x7c] sm:$0xf]
        %v421 = vld [vmem:[%s361 + $0x80] sm:$0x1]
        %v422 = vld [vmem:[%s361 + $0x84] sm:$0xf]
        %v423 = vld [vmem:[%s361 + $0x88] sm:$0xf]
        %v424 = vld [vmem:[%s361 + $0x8c] sm:$0x1]
        %v425 = vld [vmem:[%s361 + $0x90] sm:$0xf]
        %v426 = vld [vmem:[%s361 + $0x94] sm:$0xf]
        %v427 = vld [vmem:[%s361 + $0x98] sm:$0x1]
        %v428 = vld [vmem:[%s361 + $0x9c] sm:$0xf]
        %v429 = vld [vmem:[%s361 + $0xa0] sm:$0xf]
        %v430 = vld [vmem:[%s361 + $0xa4] sm:$0x1]
        %v431 = vld [vmem:[%s361 + $0xa8] sm:$0xf]
        %v432 = vld [vmem:[%s361 + $0xac] sm:$0xf]
        %v433 = vld [vmem:[%s361 + $0xb0] sm:$0x1]
        %v434 = vld [vmem:[%s361 + $0xb4] sm:$0xf]
        %v435 = vld [vmem:[%s361 + $0xb8] sm:$0xf]
        %v436 = vld [vmem:[%s361 + $0xbc] sm:$0x1]
        %v437 = vld [vmem:[%s379] sm:$0xf]
        %v438 = vld [vmem:[%s379 + $0x4] sm:$0xf]
        %v439 = vld [vmem:[%s379 + $0x8] sm:$0x1]
        %v440 = vld [vmem:[%s379 + $0xc] sm:$0xf]
        %v441 = vld [vmem:[%s379 + $0x10] sm:$0xf]
        %v442 = vld [vmem:[%s379 + $0x14] sm:$0x1]
        %v475 = vunpack.c.l.b16 %v389
        %v476 = vunpack.c.l.b16 %v390
        %v477 = vunpack.c.l.b16 %v392
        %v478 = vunpack.c.l.b16 %v393
        %v479 = vunpack.c.l.b16 %v395
        %v480 = vunpack.c.l.b16 %v396
        %v481 = vunpack.c.l.b16 %v398
        %v482 = vunpack.c.l.b16 %v399
        %v483 = vunpack.c.l.b16 %v401
        %v484 = vunpack.c.l.b16 %v402
        %v485 = vunpack.c.l.b16 %v404
        %v486 = vunpack.c.l.b16 %v405
        %v487 = vunpack.c.l.b16 %v407
        %v488 = vunpack.c.l.b16 %v408
        %v489 = vunpack.c.l.b16 %v410
        %v490 = vunpack.c.l.b16 %v411
        %v491 = vunpack.c.l.b16 %v413
        %v492 = vunpack.c.l.b16 %v414
        %v493 = vunpack.c.l.b16 %v416
        %v494 = vunpack.c.l.b16 %v417
        %v495 = vunpack.c.l.b16 %v419
        %v496 = vunpack.c.l.b16 %v420
        %v497 = vunpack.c.l.b16 %v422
        %v498 = vunpack.c.l.b16 %v423
        %v499 = vunpack.c.l.b16 %v425
        %v500 = vunpack.c.l.b16 %v426
        %v501 = vunpack.c.l.b16 %v428
        %v502 = vunpack.c.l.b16 %v429
        %v503 = vunpack.c.l.b16 %v431
        %v504 = vunpack.c.l.b16 %v432
        %v505 = vunpack.c.l.b16 %v434
        %v506 = vunpack.c.l.b16 %v435
        %v507 = vpack.c.b16 %v476, %v475
        %v508 = vpack.c.b16 %v478, %v477
        %v509 = vpack.c.b16 %v480, %v479
        %v510 = vpack.c.b16 %v482, %v481
        %v511 = vpack.c.b16 %v484, %v483
        %v512 = vpack.c.b16 %v486, %v485
        %v513 = vpack.c.b16 %v488, %v487
        %v514 = vpack.c.b16 %v490, %v489
        %v515 = vpack.c.b16 %v492, %v491
        %v516 = vpack.c.b16 %v494, %v493
        %v517 = vpack.c.b16 %v496, %v495
        %v518 = vpack.c.b16 %v498, %v497
        %v519 = vpack.c.b16 %v500, %v499
        %v520 = vpack.c.b16 %v502, %v501
        %v521 = vpack.c.b16 %v504, %v503
        %v522 = vpack.c.b16 %v506, %v505
        %v555 = vunpack.c.l.b16 %v391
        %v556 = vunpack.c.l.b16 %v394
        %v557 = vunpack.c.l.b16 %v397
        %v558 = vunpack.c.l.b16 %v400
        %v559 = vunpack.c.l.b16 %v403
        %v560 = vunpack.c.l.b16 %v406
        %v561 = vunpack.c.l.b16 %v409
        %v562 = vunpack.c.l.b16 %v412
        %v563 = vunpack.c.l.b16 %v415
        %v564 = vunpack.c.l.b16 %v418
        %v565 = vunpack.c.l.b16 %v421
        %v566 = vunpack.c.l.b16 %v424
        %v567 = vunpack.c.l.b16 %v427
        %v568 = vunpack.c.l.b16 %v430
        %v569 = vunpack.c.l.b16 %v433
        %v570 = vunpack.c.l.b16 %v436
        %v571 = vpack.c.b16 %v555, %v555
        %v572 = vpack.c.b16 %v556, %v556
        %v573 = vpack.c.b16 %v557, %v557
        %v574 = vpack.c.b16 %v558, %v558
        %v575 = vpack.c.b16 %v559, %v559
        %v576 = vpack.c.b16 %v560, %v560
        %v577 = vpack.c.b16 %v561, %v561
        %v578 = vpack.c.b16 %v562, %v562
        %v579 = vpack.c.b16 %v563, %v563
        %v580 = vpack.c.b16 %v564, %v564
        %v581 = vpack.c.b16 %v565, %v565
        %v582 = vpack.c.b16 %v566, %v566
        %v583 = vpack.c.b16 %v567, %v567
        %v584 = vpack.c.b16 %v568, %v568
        %v585 = vpack.c.b16 %v569, %v569
        %v586 = vpack.c.b16 %v570, %v570
        %vm587 = vsmask.f32 7424
        %v589 = vshrl.u32 %v507, 16
        %v591 = vshll.u32 %v507, 16
        %v593 = vrot.slane %v591, 1
        %v594 = vor.u32 %v589, %v593
        %v596 = vshll.u32 %v571, 16
        %v598 = vrot.slane %v596, 1
        %v599 = vsel %vm587, %v594, %v598
        %v601 = vshrl.u32 %v508, 16
        %v603 = vshll.u32 %v508, 16
        %v605 = vrot.slane %v603, 1
        %v606 = vor.u32 %v601, %v605
        %v608 = vshll.u32 %v572, 16
        %v610 = vrot.slane %v608, 1
        %v611 = vsel %vm587, %v606, %v610
        %v613 = vshrl.u32 %v509, 16
        %v615 = vshll.u32 %v509, 16
        %v617 = vrot.slane %v615, 1
        %v618 = vor.u32 %v613, %v617
        %v620 = vshll.u32 %v573, 16
        %v622 = vrot.slane %v620, 1
        %v623 = vsel %vm587, %v618, %v622
        %v625 = vshrl.u32 %v510, 16
        %v627 = vshll.u32 %v510, 16
        %v629 = vrot.slane %v627, 1
        %v630 = vor.u32 %v625, %v629
        %v632 = vshll.u32 %v574, 16
        %v634 = vrot.slane %v632, 1
        %v635 = vsel %vm587, %v630, %v634
        %v637 = vshrl.u32 %v511, 16
        %v639 = vshll.u32 %v511, 16
        %v641 = vrot.slane %v639, 1
        %v642 = vor.u32 %v637, %v641
        %v644 = vshll.u32 %v575, 16
        %v646 = vrot.slane %v644, 1
        %v647 = vsel %vm587, %v642, %v646
        %v649 = vshrl.u32 %v512, 16
        %v651 = vshll.u32 %v512, 16
        %v653 = vrot.slane %v651, 1
        %v654 = vor.u32 %v649, %v653
        %v656 = vshll.u32 %v576, 16
        %v658 = vrot.slane %v656, 1
        %v659 = vsel %vm587, %v654, %v658
        %v661 = vshrl.u32 %v513, 16
        %v663 = vshll.u32 %v513, 16
        %v665 = vrot.slane %v663, 1
        %v666 = vor.u32 %v661, %v665
        %v668 = vshll.u32 %v577, 16
        %v670 = vrot.slane %v668, 1
        %v671 = vsel %vm587, %v666, %v670
        %v673 = vshrl.u32 %v514, 16
        %v675 = vshll.u32 %v514, 16
        %v677 = vrot.slane %v675, 1
        %v678 = vor.u32 %v673, %v677
        %v680 = vshll.u32 %v578, 16
        %v682 = vrot.slane %v680, 1
        %v683 = vsel %vm587, %v678, %v682
        %v685 = vshrl.u32 %v515, 16
        %v687 = vshll.u32 %v515, 16
        %v689 = vrot.slane %v687, 1
        %v690 = vor.u32 %v685, %v689
        %v692 = vshll.u32 %v579, 16
        %v694 = vrot.slane %v692, 1
        %v695 = vsel %vm587, %v690, %v694
        %v697 = vshrl.u32 %v516, 16
        %v699 = vshll.u32 %v516, 16
        %v701 = vrot.slane %v699, 1
        %v702 = vor.u32 %v697, %v701
        %v704 = vshll.u32 %v580, 16
        %v706 = vrot.slane %v704, 1
        %v707 = vsel %vm587, %v702, %v706
        %v709 = vshrl.u32 %v517, 16
        %v711 = vshll.u32 %v517, 16
        %v713 = vrot.slane %v711, 1
        %v714 = vor.u32 %v709, %v713
        %v716 = vshll.u32 %v581, 16
        %v718 = vrot.slane %v716, 1
        %v719 = vsel %vm587, %v714, %v718
        %v721 = vshrl.u32 %v518, 16
        %v723 = vshll.u32 %v518, 16
        %v725 = vrot.slane %v723, 1
        %v726 = vor.u32 %v721, %v725
        %v728 = vshll.u32 %v582, 16
        %v730 = vrot.slane %v728, 1
        %v731 = vsel %vm587, %v726, %v730
        %v733 = vshrl.u32 %v519, 16
        %v735 = vshll.u32 %v519, 16
        %v737 = vrot.slane %v735, 1
        %v738 = vor.u32 %v733, %v737
        %v740 = vshll.u32 %v583, 16
        %v742 = vrot.slane %v740, 1
        %v743 = vsel %vm587, %v738, %v742
        %v745 = vshrl.u32 %v520, 16
        %v747 = vshll.u32 %v520, 16
        %v749 = vrot.slane %v747, 1
        %v750 = vor.u32 %v745, %v749
        %v752 = vshll.u32 %v584, 16
        %v754 = vrot.slane %v752, 1
        %v755 = vsel %vm587, %v750, %v754
        %v757 = vshrl.u32 %v521, 16
        %v759 = vshll.u32 %v521, 16
        %v761 = vrot.slane %v759, 1
        %v762 = vor.u32 %v757, %v761
        %v764 = vshll.u32 %v585, 16
        %v766 = vrot.slane %v764, 1
        %v767 = vsel %vm587, %v762, %v766
        %v769 = vshrl.u32 %v522, 16
        %v771 = vshll.u32 %v522, 16
        %v773 = vrot.slane %v771, 1
        %v774 = vor.u32 %v769, %v773
        %v776 = vshll.u32 %v586, 16
        %v778 = vrot.slane %v776, 1
        %v779 = vsel %vm587, %v774, %v778
        %vm796 = vcmask 1046528
        %v797 = vrot.slane %v507, 1
        %v798 = vrot.slane %v571, 1
        %v799 = vsel %vm796, %v797, %v798
        %v800 = vrot.slane %v508, 1
        %v801 = vrot.slane %v572, 1
        %v802 = vsel %vm796, %v800, %v801
        %v803 = vrot.slane %v509, 1
        %v804 = vrot.slane %v573, 1
        %v805 = vsel %vm796, %v803, %v804
        %v806 = vrot.slane %v510, 1
        %v807 = vrot.slane %v574, 1
        %v808 = vsel %vm796, %v806, %v807
        %v809 = vrot.slane %v511, 1
        %v810 = vrot.slane %v575, 1
        %v811 = vsel %vm796, %v809, %v810
        %v812 = vrot.slane %v512, 1
        %v813 = vrot.slane %v576, 1
        %v814 = vsel %vm796, %v812, %v813
        %v815 = vrot.slane %v513, 1
        %v816 = vrot.slane %v577, 1
        %v817 = vsel %vm796, %v815, %v816
        %v818 = vrot.slane %v514, 1
        %v819 = vrot.slane %v578, 1
        %v820 = vsel %vm796, %v818, %v819
        %v821 = vrot.slane %v515, 1
        %v822 = vrot.slane %v579, 1
        %v823 = vsel %vm796, %v821, %v822
        %v824 = vrot.slane %v516, 1
        %v825 = vrot.slane %v580, 1
        %v826 = vsel %vm796, %v824, %v825
        %v827 = vrot.slane %v517, 1
        %v828 = vrot.slane %v581, 1
        %v829 = vsel %vm796, %v827, %v828
        %v830 = vrot.slane %v518, 1
        %v831 = vrot.slane %v582, 1
        %v832 = vsel %vm796, %v830, %v831
        %v833 = vrot.slane %v519, 1
        %v834 = vrot.slane %v583, 1
        %v835 = vsel %vm796, %v833, %v834
        %v836 = vrot.slane %v520, 1
        %v837 = vrot.slane %v584, 1
        %v838 = vsel %vm796, %v836, %v837
        %v839 = vrot.slane %v521, 1
        %v840 = vrot.slane %v585, 1
        %v841 = vsel %vm796, %v839, %v840
        %v842 = vrot.slane %v522, 1
        %v843 = vrot.slane %v586, 1
        %v844 = vsel %vm796, %v842, %v843
        %v863 = vunpack.c.l.b16 %v437
        %v864 = vunpack.c.l.b16 %v438
        %v865 = vpack.c.b16 %v864, %v863
        %v868 = vunpack.c.l.b16 %v439
        %v869 = vpack.c.b16 %v868, %v868
        %v871 = vshrl.u32 %v865, 16
        %v873 = vshll.u32 %v865, 16
        %v875 = vrot.slane %v873, 1
        %v876 = vor.u32 %v871, %v875
        %v878 = vshll.u32 %v869, 16
        %v880 = vrot.slane %v878, 1
        %v881 = vsel %vm587, %v876, %v880
        %v883 = vrot.slane %v865, 1
        %v884 = vrot.slane %v869, 1
        %v885 = vsel %vm796, %v883, %v884
        %v889 = vunpack.c.l.b16 %v440
        %v890 = vunpack.c.l.b16 %v441
        %v891 = vpack.c.b16 %v890, %v889
        %v894 = vunpack.c.l.b16 %v442
        %v895 = vpack.c.b16 %v894, %v894
        %v897 = vshrl.u32 %v891, 16
        %v899 = vshll.u32 %v891, 16
        %v901 = vrot.slane %v899, 1
        %v902 = vor.u32 %v897, %v901
        %v904 = vshll.u32 %v895, 16
        %v906 = vrot.slane %v904, 1
        %v907 = vsel %vm587, %v902, %v906
        %v909 = vrot.slane %v891, 1
        %v910 = vrot.slane %v895, 1
        %v911 = vsel %vm796, %v909, %v910
        %v913 = vld [vmem:[%s2] sm:$0xf]
        %v914 = vld [vmem:[%s2 + $0x4] sm:$0xf]
        %v915 = vld [vmem:[%s2 + $0x8] sm:$0xf]
        %v916 = vld [vmem:[%s2 + $0xc] sm:$0xf]
        %v917 = vld [vmem:[%s2 + $0x10] sm:$0xf]
        %v918 = vld [vmem:[%s2 + $0x14] sm:$0xf]
        %v919 = vld [vmem:[%s2 + $0x18] sm:$0xf]
        %v920 = vld [vmem:[%s2 + $0x1c] sm:$0xf]
        %v921 = vld [vmem:[%s2 + $0x20] sm:$0xf]
        %v922 = vld [vmem:[%s2 + $0x24] sm:$0xf]
        %v923 = vld [vmem:[%s2 + $0x28] sm:$0xf]
        %v924 = vld [vmem:[%s2 + $0x2c] sm:$0xf]
        %v925 = vld [vmem:[%s2 + $0x30] sm:$0xf]
        %v926 = vld [vmem:[%s2 + $0x34] sm:$0xf]
        %v927 = vld [vmem:[%s2 + $0x38] sm:$0xf]
        %v928 = vld [vmem:[%s2 + $0x3c] sm:$0xf]
        %v929 = vld [vmem:[%s2 + $0x40] sm:$0xf]
        %v930 = vld [vmem:[%s2 + $0x44] sm:$0xf]
        %v931 = vld [vmem:[%s2 + $0x48] sm:$0xf]
        %v932 = vld [vmem:[%s2 + $0x4c] sm:$0xf]
        %v933 = vld [vmem:[%s2 + $0x50] sm:$0xf]
        %v934 = vld [vmem:[%s2 + $0x54] sm:$0xf]
        %v935 = vld [vmem:[%s2 + $0x58] sm:$0xf]
        %v936 = vld [vmem:[%s2 + $0x5c] sm:$0xf]
        %v937 = vld [vmem:[%s2 + $0x60] sm:$0xf]
        %v938 = vld [vmem:[%s2 + $0x64] sm:$0xf]
        %v939 = vld [vmem:[%s2 + $0x68] sm:$0xf]
        %v940 = vld [vmem:[%s2 + $0x6c] sm:$0xf]
        %v941 = vld [vmem:[%s2 + $0x70] sm:$0xf]
        %v942 = vld [vmem:[%s2 + $0x74] sm:$0xf]
        %v943 = vld [vmem:[%s2 + $0x78] sm:$0xf]
        %v944 = vld [vmem:[%s2 + $0x7c] sm:$0xf]
        %v945 = vld [vmem:[%s2 + $0x80] sm:$0xf]
        %v946 = vld [vmem:[%s2 + $0x84] sm:$0xf]
        %v947 = vld [vmem:[%s2 + $0x88] sm:$0xf]
        %v948 = vld [vmem:[%s2 + $0x8c] sm:$0xf]
        %v949 = vld [vmem:[%s2 + $0x90] sm:$0xf]
        %v950 = vld [vmem:[%s2 + $0x94] sm:$0xf]
        %v951 = vld [vmem:[%s2 + $0x98] sm:$0xf]
        %v952 = vld [vmem:[%s2 + $0x9c] sm:$0xf]
        %v953 = vld [vmem:[%s2 + $0xa0] sm:$0xf]
        %v954 = vld [vmem:[%s2 + $0xa4] sm:$0xf]
        %v955 = vld [vmem:[%s2 + $0xa8] sm:$0xf]
        %v956 = vld [vmem:[%s2 + $0xac] sm:$0xf]
        %v957 = vld [vmem:[%s2 + $0xb0] sm:$0xf]
        %v958 = vld [vmem:[%s2 + $0xb4] sm:$0xf]
        %v959 = vld [vmem:[%s2 + $0xb8] sm:$0xf]
        %v960 = vld [vmem:[%s2 + $0xbc] sm:$0xf]
        %v961 = vld [vmem:[%s2 + $0xc0] sm:$0xf]
        %v962 = vld [vmem:[%s2 + $0xc4] sm:$0xf]
        %v963 = vld [vmem:[%s2 + $0xc8] sm:$0xf]
        %v964 = vld [vmem:[%s2 + $0xcc] sm:$0xf]
        %v965 = vld [vmem:[%s2 + $0xd0] sm:$0xf]
        %v966 = vld [vmem:[%s2 + $0xd4] sm:$0xf]
        %v967 = vld [vmem:[%s2 + $0xd8] sm:$0xf]
        %v968 = vld [vmem:[%s2 + $0xdc] sm:$0xf]
        %v969 = vld [vmem:[%s2 + $0xe0] sm:$0xf]
        %v970 = vld [vmem:[%s2 + $0xe4] sm:$0xf]
        %v971 = vld [vmem:[%s2 + $0xe8] sm:$0xf]
        %v972 = vld [vmem:[%s2 + $0xec] sm:$0xf]
        %v973 = vld [vmem:[%s2 + $0xf0] sm:$0xf]
        %v974 = vld [vmem:[%s2 + $0xf4] sm:$0xf]
        %v975 = vld [vmem:[%s2 + $0xf8] sm:$0xf]
        %v976 = vld [vmem:[%s2 + $0xfc] sm:$0xf]
        %v977 = vld [vmem:[%s2 + $0x100] sm:$0xf]
        %v978 = vld [vmem:[%s2 + $0x104] sm:$0xf]
        %v979 = vld [vmem:[%s2 + $0x108] sm:$0xf]
        %v980 = vld [vmem:[%s2 + $0x10c] sm:$0xf]
        %v981 = vld [vmem:[%s2 + $0x110] sm:$0xf]
        %v982 = vld [vmem:[%s2 + $0x114] sm:$0xf]
        %v983 = vld [vmem:[%s2 + $0x118] sm:$0xf]
        %v984 = vld [vmem:[%s2 + $0x11c] sm:$0xf]
        %v985 = vld [vmem:[%s2 + $0x120] sm:$0xf]
        %v986 = vld [vmem:[%s2 + $0x124] sm:$0xf]
        %v987 = vld [vmem:[%s2 + $0x128] sm:$0xf]
        %v988 = vld [vmem:[%s2 + $0x12c] sm:$0xf]
        %v989 = vld [vmem:[%s2 + $0x130] sm:$0xf]
        %v990 = vld [vmem:[%s2 + $0x134] sm:$0xf]
        %v991 = vld [vmem:[%s2 + $0x138] sm:$0xf]
        %v992 = vld [vmem:[%s2 + $0x13c] sm:$0xf]
        %v993 = vld [vmem:[%s2 + $0x140] sm:$0xf]
        %v994 = vld [vmem:[%s2 + $0x144] sm:$0xf]
        %v995 = vld [vmem:[%s2 + $0x148] sm:$0xf]
        %v996 = vld [vmem:[%s2 + $0x14c] sm:$0xf]
        %v997 = vld [vmem:[%s2 + $0x150] sm:$0xf]
        %v998 = vld [vmem:[%s2 + $0x154] sm:$0xf]
        %v999 = vld [vmem:[%s2 + $0x158] sm:$0xf]
        %v1000 = vld [vmem:[%s2 + $0x15c] sm:$0xf]
        %v1001 = vld [vmem:[%s2 + $0x160] sm:$0xf]
        %v1002 = vld [vmem:[%s2 + $0x164] sm:$0xf]
        %v1003 = vld [vmem:[%s2 + $0x168] sm:$0xf]
        %v1004 = vld [vmem:[%s2 + $0x16c] sm:$0xf]
        %v1005 = vld [vmem:[%s2 + $0x170] sm:$0xf]
        %v1006 = vld [vmem:[%s2 + $0x174] sm:$0xf]
        %v1007 = vld [vmem:[%s2 + $0x178] sm:$0xf]
        %v1008 = vld [vmem:[%s2 + $0x17c] sm:$0xf]
        %v1009 = vld [vmem:[%s2 + $0x180] sm:$0xf]
        %v1010 = vld [vmem:[%s2 + $0x184] sm:$0xf]
        %v1011 = vld [vmem:[%s2 + $0x188] sm:$0xf]
        %v1012 = vld [vmem:[%s2 + $0x18c] sm:$0xf]
        %v1013 = vld [vmem:[%s2 + $0x190] sm:$0xf]
        %v1014 = vld [vmem:[%s2 + $0x194] sm:$0xf]
        %v1015 = vld [vmem:[%s2 + $0x198] sm:$0xf]
        %v1016 = vld [vmem:[%s2 + $0x19c] sm:$0xf]
        %v1017 = vld [vmem:[%s2 + $0x1a0] sm:$0xf]
        %v1018 = vld [vmem:[%s2 + $0x1a4] sm:$0xf]
        %v1019 = vld [vmem:[%s2 + $0x1a8] sm:$0xf]
        %v1020 = vld [vmem:[%s2 + $0x1ac] sm:$0xf]
        %v1021 = vld [vmem:[%s2 + $0x1b0] sm:$0xf]
        %v1022 = vld [vmem:[%s2 + $0x1b4] sm:$0xf]
        %v1023 = vld [vmem:[%s2 + $0x1b8] sm:$0xf]
        %v1024 = vld [vmem:[%s2 + $0x1bc] sm:$0xf]
        %v1025 = vld [vmem:[%s2 + $0x1c0] sm:$0xf]
        %v1026 = vld [vmem:[%s2 + $0x1c4] sm:$0xf]
        %v1027 = vld [vmem:[%s2 + $0x1c8] sm:$0xf]
        %v1028 = vld [vmem:[%s2 + $0x1cc] sm:$0xf]
        %v1029 = vld [vmem:[%s2 + $0x1d0] sm:$0xf]
        %v1030 = vld [vmem:[%s2 + $0x1d4] sm:$0xf]
        %v1031 = vld [vmem:[%s2 + $0x1d8] sm:$0xf]
        %v1032 = vld [vmem:[%s2 + $0x1dc] sm:$0xf]
        %v1033 = vld [vmem:[%s2 + $0x1e0] sm:$0xf]
        %v1034 = vld [vmem:[%s2 + $0x1e4] sm:$0xf]
        %v1035 = vld [vmem:[%s2 + $0x1e8] sm:$0xf]
        %v1036 = vld [vmem:[%s2 + $0x1ec] sm:$0xf]
        %v1037 = vld [vmem:[%s2 + $0x1f0] sm:$0xf]
        %v1038 = vld [vmem:[%s2 + $0x1f4] sm:$0xf]
        %v1039 = vld [vmem:[%s2 + $0x1f8] sm:$0xf]
        %v1040 = vld [vmem:[%s2 + $0x1fc] sm:$0xf]
        %v1041 = vld [vmem:[%s2 + $0x200] sm:$0xf]
        %v1042 = vld [vmem:[%s2 + $0x204] sm:$0xf]
        %v1043 = vld [vmem:[%s2 + $0x208] sm:$0xf]
        %v1044 = vld [vmem:[%s2 + $0x20c] sm:$0xf]
        %v1045 = vld [vmem:[%s2 + $0x210] sm:$0xf]
        %v1046 = vld [vmem:[%s2 + $0x214] sm:$0xf]
        %v1047 = vld [vmem:[%s2 + $0x218] sm:$0xf]
        %v1048 = vld [vmem:[%s2 + $0x21c] sm:$0xf]
        %v1049 = vld [vmem:[%s2 + $0x220] sm:$0xf]
        %v1050 = vld [vmem:[%s2 + $0x224] sm:$0xf]
        %v1051 = vld [vmem:[%s2 + $0x228] sm:$0xf]
        %v1052 = vld [vmem:[%s2 + $0x22c] sm:$0xf]
        %v1053 = vld [vmem:[%s2 + $0x230] sm:$0xf]
        %v1054 = vld [vmem:[%s2 + $0x234] sm:$0xf]
        %v1055 = vld [vmem:[%s2 + $0x238] sm:$0xf]
        %v1056 = vld [vmem:[%s2 + $0x23c] sm:$0xf]
        %v1201 = vunpack.c.l.b16 %v913
        %v1202 = vunpack.c.l.b16 %v914
        %v1203 = vunpack.c.l.b16 %v915
        %v1204 = vunpack.c.l.b16 %v916
        %v1205 = vunpack.c.l.b16 %v917
        %v1206 = vunpack.c.l.b16 %v918
        %v1207 = vunpack.c.l.b16 %v919
        %v1208 = vunpack.c.l.b16 %v920
        %v1209 = vunpack.c.l.b16 %v921
        %v1210 = vunpack.c.l.b16 %v922
        %v1211 = vunpack.c.l.b16 %v923
        %v1212 = vunpack.c.l.b16 %v924
        %v1213 = vunpack.c.l.b16 %v925
        %v1214 = vunpack.c.l.b16 %v926
        %v1215 = vunpack.c.l.b16 %v927
        %v1216 = vunpack.c.l.b16 %v928
        %v1217 = vunpack.c.l.b16 %v929
        %v1218 = vunpack.c.l.b16 %v930
        %v1219 = vunpack.c.l.b16 %v931
        %v1220 = vunpack.c.l.b16 %v932
        %v1221 = vunpack.c.l.b16 %v933
        %v1222 = vunpack.c.l.b16 %v934
        %v1223 = vunpack.c.l.b16 %v935
        %v1224 = vunpack.c.l.b16 %v936
        %v1225 = vunpack.c.l.b16 %v937
        %v1226 = vunpack.c.l.b16 %v938
        %v1227 = vunpack.c.l.b16 %v939
        %v1228 = vunpack.c.l.b16 %v940
        %v1229 = vunpack.c.l.b16 %v941
        %v1230 = vunpack.c.l.b16 %v942
        %v1231 = vunpack.c.l.b16 %v943
        %v1232 = vunpack.c.l.b16 %v944
        %v1233 = vunpack.c.l.b16 %v945
        %v1234 = vunpack.c.l.b16 %v946
        %v1235 = vunpack.c.l.b16 %v947
        %v1236 = vunpack.c.l.b16 %v948
        %v1237 = vunpack.c.l.b16 %v949
        %v1238 = vunpack.c.l.b16 %v950
        %v1239 = vunpack.c.l.b16 %v951
        %v1240 = vunpack.c.l.b16 %v952
        %v1241 = vunpack.c.l.b16 %v953
        %v1242 = vunpack.c.l.b16 %v954
        %v1243 = vunpack.c.l.b16 %v955
        %v1244 = vunpack.c.l.b16 %v956
        %v1245 = vunpack.c.l.b16 %v957
        %v1246 = vunpack.c.l.b16 %v958
        %v1247 = vunpack.c.l.b16 %v959
        %v1248 = vunpack.c.l.b16 %v960
        %v1249 = vunpack.c.l.b16 %v961
        %v1250 = vunpack.c.l.b16 %v962
        %v1251 = vunpack.c.l.b16 %v963
        %v1252 = vunpack.c.l.b16 %v964
        %v1253 = vunpack.c.l.b16 %v965
        %v1254 = vunpack.c.l.b16 %v966
        %v1255 = vunpack.c.l.b16 %v967
        %v1256 = vunpack.c.l.b16 %v968
        %v1257 = vunpack.c.l.b16 %v969
        %v1258 = vunpack.c.l.b16 %v970
        %v1259 = vunpack.c.l.b16 %v971
        %v1260 = vunpack.c.l.b16 %v972
        %v1261 = vunpack.c.l.b16 %v973
        %v1262 = vunpack.c.l.b16 %v974
        %v1263 = vunpack.c.l.b16 %v975
        %v1264 = vunpack.c.l.b16 %v976
        %v1265 = vunpack.c.l.b16 %v977
        %v1266 = vunpack.c.l.b16 %v978
        %v1267 = vunpack.c.l.b16 %v979
        %v1268 = vunpack.c.l.b16 %v980
        %v1269 = vunpack.c.l.b16 %v981
        %v1270 = vunpack.c.l.b16 %v982
        %v1271 = vunpack.c.l.b16 %v983
        %v1272 = vunpack.c.l.b16 %v984
        %v1273 = vunpack.c.l.b16 %v985
        %v1274 = vunpack.c.l.b16 %v986
        %v1275 = vunpack.c.l.b16 %v987
        %v1276 = vunpack.c.l.b16 %v988
        %v1277 = vunpack.c.l.b16 %v989
        %v1278 = vunpack.c.l.b16 %v990
        %v1279 = vunpack.c.l.b16 %v991
        %v1280 = vunpack.c.l.b16 %v992
        %v1281 = vunpack.c.l.b16 %v993
        %v1282 = vunpack.c.l.b16 %v994
        %v1283 = vunpack.c.l.b16 %v995
        %v1284 = vunpack.c.l.b16 %v996
        %v1285 = vunpack.c.l.b16 %v997
        %v1286 = vunpack.c.l.b16 %v998
        %v1287 = vunpack.c.l.b16 %v999
        %v1288 = vunpack.c.l.b16 %v1000
        %v1289 = vunpack.c.l.b16 %v1001
        %v1290 = vunpack.c.l.b16 %v1002
        %v1291 = vunpack.c.l.b16 %v1003
        %v1292 = vunpack.c.l.b16 %v1004
        %v1293 = vunpack.c.l.b16 %v1005
        %v1294 = vunpack.c.l.b16 %v1006
        %v1295 = vunpack.c.l.b16 %v1007
        %v1296 = vunpack.c.l.b16 %v1008
        %v1297 = vunpack.c.l.b16 %v1009
        %v1298 = vunpack.c.l.b16 %v1010
        %v1299 = vunpack.c.l.b16 %v1011
        %v1300 = vunpack.c.l.b16 %v1012
        %v1301 = vunpack.c.l.b16 %v1013
        %v1302 = vunpack.c.l.b16 %v1014
        %v1303 = vunpack.c.l.b16 %v1015
        %v1304 = vunpack.c.l.b16 %v1016
        %v1305 = vunpack.c.l.b16 %v1017
        %v1306 = vunpack.c.l.b16 %v1018
        %v1307 = vunpack.c.l.b16 %v1019
        %v1308 = vunpack.c.l.b16 %v1020
        %v1309 = vunpack.c.l.b16 %v1021
        %v1310 = vunpack.c.l.b16 %v1022
        %v1311 = vunpack.c.l.b16 %v1023
        %v1312 = vunpack.c.l.b16 %v1024
        %v1313 = vunpack.c.l.b16 %v1025
        %v1314 = vunpack.c.l.b16 %v1026
        %v1315 = vunpack.c.l.b16 %v1027
        %v1316 = vunpack.c.l.b16 %v1028
        %v1317 = vunpack.c.l.b16 %v1029
        %v1318 = vunpack.c.l.b16 %v1030
        %v1319 = vunpack.c.l.b16 %v1031
        %v1320 = vunpack.c.l.b16 %v1032
        %v1321 = vunpack.c.l.b16 %v1033
        %v1322 = vunpack.c.l.b16 %v1034
        %v1323 = vunpack.c.l.b16 %v1035
        %v1324 = vunpack.c.l.b16 %v1036
        %v1325 = vunpack.c.l.b16 %v1037
        %v1326 = vunpack.c.l.b16 %v1038
        %v1327 = vunpack.c.l.b16 %v1039
        %v1328 = vunpack.c.l.b16 %v1040
        %v1329 = vunpack.c.l.b16 %v1041
        %v1330 = vunpack.c.l.b16 %v1042
        %v1331 = vunpack.c.l.b16 %v1043
        %v1332 = vunpack.c.l.b16 %v1044
        %v1333 = vunpack.c.l.b16 %v1045
        %v1334 = vunpack.c.l.b16 %v1046
        %v1335 = vunpack.c.l.b16 %v1047
        %v1336 = vunpack.c.l.b16 %v1048
        %v1337 = vunpack.c.l.b16 %v1049
        %v1338 = vunpack.c.l.b16 %v1050
        %v1339 = vunpack.c.l.b16 %v1051
        %v1340 = vunpack.c.l.b16 %v1052
        %v1341 = vunpack.c.l.b16 %v1053
        %v1342 = vunpack.c.l.b16 %v1054
        %v1343 = vunpack.c.l.b16 %v1055
        %v1344 = vunpack.c.l.b16 %v1056
        %v1345 = vpack.c.b16 %v1202, %v1201
        %v1346 = vpack.c.b16 %v1204, %v1203
        %v1347 = vpack.c.b16 %v1206, %v1205
        %v1348 = vpack.c.b16 %v1208, %v1207
        %v1349 = vpack.c.b16 %v1210, %v1209
        %v1350 = vpack.c.b16 %v1212, %v1211
        %v1351 = vpack.c.b16 %v1214, %v1213
        %v1352 = vpack.c.b16 %v1216, %v1215
        %v1353 = vpack.c.b16 %v1218, %v1217
        %v1354 = vpack.c.b16 %v1220, %v1219
        %v1355 = vpack.c.b16 %v1222, %v1221
        %v1356 = vpack.c.b16 %v1224, %v1223
        %v1357 = vpack.c.b16 %v1226, %v1225
        %v1358 = vpack.c.b16 %v1228, %v1227
        %v1359 = vpack.c.b16 %v1230, %v1229
        %v1360 = vpack.c.b16 %v1232, %v1231
        %v1361 = vpack.c.b16 %v1234, %v1233
        %v1362 = vpack.c.b16 %v1236, %v1235
        %v1363 = vpack.c.b16 %v1238, %v1237
        %v1364 = vpack.c.b16 %v1240, %v1239
        %v1365 = vpack.c.b16 %v1242, %v1241
        %v1366 = vpack.c.b16 %v1244, %v1243
        %v1367 = vpack.c.b16 %v1246, %v1245
        %v1368 = vpack.c.b16 %v1248, %v1247
        %v1369 = vpack.c.b16 %v1250, %v1249
        %v1370 = vpack.c.b16 %v1252, %v1251
        %v1371 = vpack.c.b16 %v1254, %v1253
        %v1372 = vpack.c.b16 %v1256, %v1255
        %v1373 = vpack.c.b16 %v1258, %v1257
        %v1374 = vpack.c.b16 %v1260, %v1259
        %v1375 = vpack.c.b16 %v1262, %v1261
        %v1376 = vpack.c.b16 %v1264, %v1263
        %v1377 = vpack.c.b16 %v1266, %v1265
        %v1378 = vpack.c.b16 %v1268, %v1267
        %v1379 = vpack.c.b16 %v1270, %v1269
        %v1380 = vpack.c.b16 %v1272, %v1271
        %v1381 = vpack.c.b16 %v1274, %v1273
        %v1382 = vpack.c.b16 %v1276, %v1275
        %v1383 = vpack.c.b16 %v1278, %v1277
        %v1384 = vpack.c.b16 %v1280, %v1279
        %v1385 = vpack.c.b16 %v1282, %v1281
        %v1386 = vpack.c.b16 %v1284, %v1283
        %v1387 = vpack.c.b16 %v1286, %v1285
        %v1388 = vpack.c.b16 %v1288, %v1287
        %v1389 = vpack.c.b16 %v1290, %v1289
        %v1390 = vpack.c.b16 %v1292, %v1291
        %v1391 = vpack.c.b16 %v1294, %v1293
        %v1392 = vpack.c.b16 %v1296, %v1295
        %v1393 = vpack.c.b16 %v1298, %v1297
        %v1394 = vpack.c.b16 %v1300, %v1299
        %v1395 = vpack.c.b16 %v1302, %v1301
        %v1396 = vpack.c.b16 %v1304, %v1303
        %v1397 = vpack.c.b16 %v1306, %v1305
        %v1398 = vpack.c.b16 %v1308, %v1307
        %v1399 = vpack.c.b16 %v1310, %v1309
        %v1400 = vpack.c.b16 %v1312, %v1311
        %v1401 = vpack.c.b16 %v1314, %v1313
        %v1402 = vpack.c.b16 %v1316, %v1315
        %v1403 = vpack.c.b16 %v1318, %v1317
        %v1404 = vpack.c.b16 %v1320, %v1319
        %v1405 = vpack.c.b16 %v1322, %v1321
        %v1406 = vpack.c.b16 %v1324, %v1323
        %v1407 = vpack.c.b16 %v1326, %v1325
        %v1408 = vpack.c.b16 %v1328, %v1327
        %v1409 = vpack.c.b16 %v1330, %v1329
        %v1410 = vpack.c.b16 %v1332, %v1331
        %v1411 = vpack.c.b16 %v1334, %v1333
        %v1412 = vpack.c.b16 %v1336, %v1335
        %v1413 = vpack.c.b16 %v1338, %v1337
        %v1414 = vpack.c.b16 %v1340, %v1339
        %v1415 = vpack.c.b16 %v1342, %v1341
        %v1416 = vpack.c.b16 %v1344, %v1343
        %1489 = vmatprep.subr.bf16.mxu0 0
        %1490 = vmatpush1.bf16.msra.mxu0 %v1345
        %1491 = vmatprep.subr.bf16.mxu0 0
        %1492 = vmatpush1.bf16.msra.mxu0 %v1346
        %1493 = vmatprep.subr.bf16.mxu0 0
        %1494 = vmatpush1.bf16.msra.mxu0 %v1347
        %1495 = vmatprep.subr.bf16.mxu0 0
        %1496 = vmatpush1.bf16.msra.mxu0 %v1348
        %1497 = vmatprep.subr.bf16.mxu0 0
        %1498 = vmatpush1.bf16.msra.mxu0 %v1349
        %1499 = vmatprep.subr.bf16.mxu0 0
        %1500 = vmatpush1.bf16.msra.mxu0 %v1350
        %1501 = vmatprep.subr.bf16.mxu0 0
        %1502 = vmatpush1.bf16.msra.mxu0 %v1351
        %1503 = vmatprep.subr.bf16.mxu0 0
        %1504 = vmatpush1.bf16.msra.mxu0 %v1352
        %1505 = vmatprep.subr.bf16.mxu0 0
        %1506 = vmatpush1.bf16.msra.mxu0 %v1353
        %1507 = vmatprep.subr.bf16.mxu0 0
        %1508 = vmatpush1.bf16.msra.mxu0 %v1354
        %1509 = vmatprep.subr.bf16.mxu0 0
        %1510 = vmatpush1.bf16.msra.mxu0 %v1355
        %1511 = vmatprep.subr.bf16.mxu0 0
        %1512 = vmatpush1.bf16.msra.mxu0 %v1356
        %1513 = vmatprep.subr.bf16.mxu0 0
        %1514 = vmatpush1.bf16.msra.mxu0 %v1357
        %1515 = vmatprep.subr.bf16.mxu0 0
        %1516 = vmatpush1.bf16.msra.mxu0 %v1358
        %1517 = vmatprep.subr.bf16.mxu0 0
        %1518 = vmatpush1.bf16.msra.mxu0 %v1359
        %1519 = vmatprep.subr.bf16.mxu0 0
        %1520 = vmatpush1.bf16.msra.mxu0 %v1360
        %1521 = vmatprep.mubr.bf16.mxu0 %v599
        %1522 = vmatmul.mubr.bf16.gmra.mrb[0].mxu0 %v507
        %v1523 = vpop.f32.mrb[0].mxu0
        %v1524 = vadd.f32 0.0, %v1523
        %v1525 = vpop.f32.mrb[0].mxu0
        %v1526 = vpop.f32.mrb[0].mxu0
        %v1527 = vadd.f32 0.0, %v1526
        %v1528 = vpop.f32.mrb[0].mxu0
        %1529 = vmatprep.mubr.bf16.mxu0 %v611
        %1530 = vmatmul.mubr.bf16.gmra.mrb[0].mxu0 %v508
        %v1531 = vpop.f32.mrb[0].mxu0
        %v1532 = vadd.f32 0.0, %v1531
        %v1533 = vpop.f32.mrb[0].mxu0
        %v1534 = vpop.f32.mrb[0].mxu0
        %v1535 = vadd.f32 0.0, %v1534
        %v1536 = vpop.f32.mrb[0].mxu0
        %1537 = vmatprep.mubr.bf16.mxu0 %v623
        %1538 = vmatmul.mubr.bf16.gmra.mrb[0].mxu0 %v509
        %v1539 = vpop.f32.mrb[0].mxu0
        %v1540 = vadd.f32 0.0, %v1539
        %v1541 = vpop.f32.mrb[0].mxu0
        %v1542 = vpop.f32.mrb[0].mxu0
        %v1543 = vadd.f32 0.0, %v1542
        %v1544 = vpop.f32.mrb[0].mxu0
        %1545 = vmatprep.mubr.bf16.mxu0 %v635
        %1546 = vmatmul.mubr.bf16.gmra.mrb[0].mxu0 %v510
        %v1547 = vpop.f32.mrb[0].mxu0
        %v1548 = vadd.f32 0.0, %v1547
        %v1549 = vpop.f32.mrb[0].mxu0
        %v1550 = vpop.f32.mrb[0].mxu0
        %v1551 = vadd.f32 0.0, %v1550
        %v1552 = vpop.f32.mrb[0].mxu0
        %1553 = vmatprep.mubr.bf16.mxu0 %v647
        %1554 = vmatmul.mubr.bf16.gmra.mrb[0].mxu0 %v511
        %v1555 = vpop.f32.mrb[0].mxu0
        %v1556 = vadd.f32 0.0, %v1555
        %v1557 = vpop.f32.mrb[0].mxu0
        %v1558 = vpop.f32.mrb[0].mxu0
        %v1559 = vadd.f32 0.0, %v1558
        %v1560 = vpop.f32.mrb[0].mxu0
        %1561 = vmatprep.mubr.bf16.mxu0 %v659
        %1562 = vmatmul.mubr.bf16.gmra.mrb[0].mxu0 %v512
        %v1563 = vpop.f32.mrb[0].mxu0
        %v1564 = vadd.f32 0.0, %v1563
        %v1565 = vpop.f32.mrb[0].mxu0
        %v1566 = vpop.f32.mrb[0].mxu0
        %v1567 = vadd.f32 0.0, %v1566
        %v1568 = vpop.f32.mrb[0].mxu0
        %1569 = vmatprep.mubr.bf16.mxu0 %v671
        %1570 = vmatmul.mubr.bf16.gmra.mrb[0].mxu0 %v513
        %v1571 = vpop.f32.mrb[0].mxu0
        %v1572 = vadd.f32 0.0, %v1571
        %v1573 = vpop.f32.mrb[0].mxu0
        %v1574 = vpop.f32.mrb[0].mxu0
        %v1575 = vadd.f32 0.0, %v1574
        %v1576 = vpop.f32.mrb[0].mxu0
        %1577 = vmatprep.mubr.bf16.mxu0 %v683
        %1578 = vmatmul.mubr.bf16.gmra.mrb[0].mxu0 %v514
        %v1579 = vpop.f32.mrb[0].mxu0
        %v1580 = vadd.f32 0.0, %v1579
        %v1581 = vpop.f32.mrb[0].mxu0
        %v1582 = vpop.f32.mrb[0].mxu0
        %v1583 = vadd.f32 0.0, %v1582
        %v1584 = vpop.f32.mrb[0].mxu0
        %1585 = vmatprep.mubr.bf16.mxu0 %v695
        %1586 = vmatmul.mubr.bf16.gmra.mrb[0].mxu0 %v515
        %v1587 = vpop.f32.mrb[0].mxu0
        %v1588 = vadd.f32 0.0, %v1587
        %v1589 = vpop.f32.mrb[0].mxu0
        %v1590 = vpop.f32.mrb[0].mxu0
        %v1591 = vadd.f32 0.0, %v1590
        %v1592 = vpop.f32.mrb[0].mxu0
        %1593 = vmatprep.mubr.bf16.mxu0 %v707
        %1594 = vmatmul.mubr.bf16.gmra.mrb[0].mxu0 %v516
        %v1595 = vpop.f32.mrb[0].mxu0
        %v1596 = vadd.f32 0.0, %v1595
        %v1597 = vpop.f32.mrb[0].mxu0
        %v1598 = vpop.f32.mrb[0].mxu0
        %v1599 = vadd.f32 0.0, %v1598
        %v1600 = vpop.f32.mrb[0].mxu0
        %1601 = vmatprep.mubr.bf16.mxu0 %v719
        %1602 = vmatmul.mubr.bf16.gmra.mrb[0].mxu0 %v517
        %v1603 = vpop.f32.mrb[0].mxu0
        %v1604 = vadd.f32 0.0, %v1603
        %v1605 = vpop.f32.mrb[0].mxu0
        %v1606 = vpop.f32.mrb[0].mxu0
        %v1607 = vadd.f32 0.0, %v1606
        %v1608 = vpop.f32.mrb[0].mxu0
        %1609 = vmatprep.mubr.bf16.mxu0 %v731
        %1610 = vmatmul.mubr.bf16.gmra.mrb[0].mxu0 %v518
        %v1611 = vpop.f32.mrb[0].mxu0
        %v1612 = vadd.f32 0.0, %v1611
        %v1613 = vpop.f32.mrb[0].mxu0
        %v1614 = vpop.f32.mrb[0].mxu0
        %v1615 = vadd.f32 0.0, %v1614
        %v1616 = vpop.f32.mrb[0].mxu0
        %1617 = vmatprep.mubr.bf16.mxu0 %v743
        %1618 = vmatmul.mubr.bf16.gmra.mrb[0].mxu0 %v519
        %v1619 = vpop.f32.mrb[0].mxu0
        %v1620 = vadd.f32 0.0, %v1619
        %v1621 = vpop.f32.mrb[0].mxu0
        %v1622 = vpop.f32.mrb[0].mxu0
        %v1623 = vadd.f32 0.0, %v1622
        %v1624 = vpop.f32.mrb[0].mxu0
        %1625 = vmatprep.mubr.bf16.mxu0 %v755
        %1626 = vmatmul.mubr.bf16.gmra.mrb[0].mxu0 %v520
        %v1627 = vpop.f32.mrb[0].mxu0
        %v1628 = vadd.f32 0.0, %v1627
        %v1629 = vpop.f32.mrb[0].mxu0
        %v1630 = vpop.f32.mrb[0].mxu0
        %v1631 = vadd.f32 0.0, %v1630
        %v1632 = vpop.f32.mrb[0].mxu0
        %1633 = vmatprep.mubr.bf16.mxu0 %v767
        %1634 = vmatmul.mubr.bf16.gmra.mrb[0].mxu0 %v521
        %v1635 = vpop.f32.mrb[0].mxu0
        %v1636 = vadd.f32 0.0, %v1635
        %v1637 = vpop.f32.mrb[0].mxu0
        %v1638 = vpop.f32.mrb[0].mxu0
        %v1639 = vadd.f32 0.0, %v1638
        %v1640 = vpop.f32.mrb[0].mxu0
        %1641 = vmatprep.mubr.bf16.mxu0 %v779
        %1642 = vmatmul.mubr.bf16.gmra.mrb[0].mxu0 %v522
        %v1643 = vpop.f32.mrb[0].mxu0
        %v1644 = vadd.f32 0.0, %v1643
        %v1645 = vpop.f32.mrb[0].mxu0
        %v1646 = vpop.f32.mrb[0].mxu0
        %v1647 = vadd.f32 0.0, %v1646
        %v1648 = vpop.f32.mrb[0].mxu0
        %1649 = vdwg.mxu0
        %1650 = vmatprep.subr.bf16.mxu0 0
        %1651 = vmatpush1.bf16.msra.mxu0 %v1361
        %1652 = vmatprep.subr.bf16.mxu0 0
        %1653 = vmatpush1.bf16.msra.mxu0 %v1362
        %1654 = vmatprep.subr.bf16.mxu0 0
        %1655 = vmatpush1.bf16.msra.mxu0 %v1363
        %1656 = vmatprep.subr.bf16.mxu0 0
        %1657 = vmatpush1.bf16.msra.mxu0 %v1364
        %1658 = vmatprep.subr.bf16.mxu0 0
        %1659 = vmatpush1.bf16.msra.mxu0 %v1365
        %1660 = vmatprep.subr.bf16.mxu0 0
        %1661 = vmatpush1.bf16.msra.mxu0 %v1366
        %1662 = vmatprep.subr.bf16.mxu0 0
        %1663 = vmatpush1.bf16.msra.mxu0 %v1367
        %1664 = vmatprep.subr.bf16.mxu0 0
        %1665 = vmatpush1.bf16.msra.mxu0 %v1368
        %1666 = vmatprep.subr.bf16.mxu0 0
        %1667 = vmatpush1.bf16.msra.mxu0 %v1369
        %1668 = vmatprep.subr.bf16.mxu0 0
        %1669 = vmatpush1.bf16.msra.mxu0 %v1370
        %1670 = vmatprep.subr.bf16.mxu0 0
        %1671 = vmatpush1.bf16.msra.mxu0 %v1371
        %1672 = vmatprep.subr.bf16.mxu0 0
        %1673 = vmatpush1.bf16.msra.mxu0 %v1372
        %1674 = vmatprep.subr.bf16.mxu0 0
        %1675 = vmatpush1.bf16.msra.mxu0 %v1373
        %1676 = vmatprep.subr.bf16.mxu0 0
        %1677 = vmatpush1.bf16.msra.mxu0 %v1374
        %1678 = vmatprep.subr.bf16.mxu0 0
        %1679 = vmatpush1.bf16.msra.mxu0 %v1375
        %1680 = vmatprep.subr.bf16.mxu0 0
        %1681 = vmatpush1.bf16.msra.mxu0 %v1376
        %1682 = vmatprep.mubr.bf16.mxu0 %v508
        %1683 = vmatmul.mubr.bf16.gmra.mrb[0].mxu0 %v799
        %v1684 = vpop.f32.mrb[0].mxu0
        %v1685 = vadd.f32 %v1524, %v1684
        %v1686 = vpop.f32.mrb[0].mxu0
        %v1687 = vpop.f32.mrb[0].mxu0
        %v1688 = vadd.f32 %v1527, %v1687
        %v1689 = vpop.f32.mrb[0].mxu0
        %1690 = vmatprep.mubr.bf16.mxu0 %v509
        %1691 = vmatmul.mubr.bf16.gmra.mrb[0].mxu0 %v802
        %v1692 = vpop.f32.mrb[0].mxu0
        %v1693 = vadd.f32 %v1532, %v1692
        %v1694 = vpop.f32.mrb[0].mxu0
        %v1695 = vpop.f32.mrb[0].mxu0
        %v1696 = vadd.f32 %v1535, %v1695
        %v1697 = vpop.f32.mrb[0].mxu0
        %1698 = vmatprep.mubr.bf16.mxu0 %v510
        %1699 = vmatmul.mubr.bf16.gmra.mrb[0].mxu0 %v805
        %v1700 = vpop.f32.mrb[0].mxu0
        %v1701 = vadd.f32 %v1540, %v1700
        %v1702 = vpop.f32.mrb[0].mxu0
        %v1703 = vpop.f32.mrb[0].mxu0
        %v1704 = vadd.f32 %v1543, %v1703
        %v1705 = vpop.f32.mrb[0].mxu0
        %1706 = vmatprep.mubr.bf16.mxu0 %v511
        %1707 = vmatmul.mubr.bf16.gmra.mrb[0].mxu0 %v808
        %v1708 = vpop.f32.mrb[0].mxu0
        %v1709 = vadd.f32 %v1548, %v1708
        %v1710 = vpop.f32.mrb[0].mxu0
        %v1711 = vpop.f32.mrb[0].mxu0
        %v1712 = vadd.f32 %v1551, %v1711
        %v1713 = vpop.f32.mrb[0].mxu0
        %1714 = vmatprep.mubr.bf16.mxu0 %v512
        %1715 = vmatmul.mubr.bf16.gmra.mrb[0].mxu0 %v811
        %v1716 = vpop.f32.mrb[0].mxu0
        %v1717 = vadd.f32 %v1556, %v1716
        %v1718 = vpop.f32.mrb[0].mxu0
        %v1719 = vpop.f32.mrb[0].mxu0
        %v1720 = vadd.f32 %v1559, %v1719
        %v1721 = vpop.f32.mrb[0].mxu0
        %1722 = vmatprep.mubr.bf16.mxu0 %v513
        %1723 = vmatmul.mubr.bf16.gmra.mrb[0].mxu0 %v814
        %v1724 = vpop.f32.mrb[0].mxu0
        %v1725 = vadd.f32 %v1564, %v1724
        %v1726 = vpop.f32.mrb[0].mxu0
        %v1727 = vpop.f32.mrb[0].mxu0
        %v1728 = vadd.f32 %v1567, %v1727
        %v1729 = vpop.f32.mrb[0].mxu0
        %1730 = vmatprep.mubr.bf16.mxu0 %v514
        %1731 = vmatmul.mubr.bf16.gmra.mrb[0].mxu0 %v817
        %v1732 = vpop.f32.mrb[0].mxu0
        %v1733 = vadd.f32 %v1572, %v1732
        %v1734 = vpop.f32.mrb[0].mxu0
        %v1735 = vpop.f32.mrb[0].mxu0
        %v1736 = vadd.f32 %v1575, %v1735
        %v1737 = vpop.f32.mrb[0].mxu0
        %1738 = vmatprep.mubr.bf16.mxu0 %v515
        %1739 = vmatmul.mubr.bf16.gmra.mrb[0].mxu0 %v820
        %v1740 = vpop.f32.mrb[0].mxu0
        %v1741 = vadd.f32 %v1580, %v1740
        %v1742 = vpop.f32.mrb[0].mxu0
        %v1743 = vpop.f32.mrb[0].mxu0
        %v1744 = vadd.f32 %v1583, %v1743
        %v1745 = vpop.f32.mrb[0].mxu0
        %1746 = vmatprep.mubr.bf16.mxu0 %v516
        %1747 = vmatmul.mubr.bf16.gmra.mrb[0].mxu0 %v823
        %v1748 = vpop.f32.mrb[0].mxu0
        %v1749 = vadd.f32 %v1588, %v1748
        %v1750 = vpop.f32.mrb[0].mxu0
        %v1751 = vpop.f32.mrb[0].mxu0
        %v1752 = vadd.f32 %v1591, %v1751
        %v1753 = vpop.f32.mrb[0].mxu0
        %1754 = vmatprep.mubr.bf16.mxu0 %v517
        %1755 = vmatmul.mubr.bf16.gmra.mrb[0].mxu0 %v826
        %v1756 = vpop.f32.mrb[0].mxu0
        %v1757 = vadd.f32 %v1596, %v1756
        %v1758 = vpop.f32.mrb[0].mxu0
        %v1759 = vpop.f32.mrb[0].mxu0
        %v1760 = vadd.f32 %v1599, %v1759
        %v1761 = vpop.f32.mrb[0].mxu0
        %1762 = vmatprep.mubr.bf16.mxu0 %v518
        %1763 = vmatmul.mubr.bf16.gmra.mrb[0].mxu0 %v829
        %v1764 = vpop.f32.mrb[0].mxu0
        %v1765 = vadd.f32 %v1604, %v1764
        %v1766 = vpop.f32.mrb[0].mxu0
        %v1767 = vpop.f32.mrb[0].mxu0
        %v1768 = vadd.f32 %v1607, %v1767
        %v1769 = vpop.f32.mrb[0].mxu0
        %1770 = vmatprep.mubr.bf16.mxu0 %v519
        %1771 = vmatmul.mubr.bf16.gmra.mrb[0].mxu0 %v832
        %v1772 = vpop.f32.mrb[0].mxu0
        %v1773 = vadd.f32 %v1612, %v1772
        %v1774 = vpop.f32.mrb[0].mxu0
        %v1775 = vpop.f32.mrb[0].mxu0
        %v1776 = vadd.f32 %v1615, %v1775
        %v1777 = vpop.f32.mrb[0].mxu0
        %1778 = vmatprep.mubr.bf16.mxu0 %v520
        %1779 = vmatmul.mubr.bf16.gmra.mrb[0].mxu0 %v835
        %v1780 = vpop.f32.mrb[0].mxu0
        %v1781 = vadd.f32 %v1620, %v1780
        %v1782 = vpop.f32.mrb[0].mxu0
        %v1783 = vpop.f32.mrb[0].mxu0
        %v1784 = vadd.f32 %v1623, %v1783
        %v1785 = vpop.f32.mrb[0].mxu0
        %1786 = vmatprep.mubr.bf16.mxu0 %v521
        %1787 = vmatmul.mubr.bf16.gmra.mrb[0].mxu0 %v838
        %v1788 = vpop.f32.mrb[0].mxu0
        %v1789 = vadd.f32 %v1628, %v1788
        %v1790 = vpop.f32.mrb[0].mxu0
        %v1791 = vpop.f32.mrb[0].mxu0
        %v1792 = vadd.f32 %v1631, %v1791
        %v1793 = vpop.f32.mrb[0].mxu0
        %1794 = vmatprep.mubr.bf16.mxu0 %v522
        %1795 = vmatmul.mubr.bf16.gmra.mrb[0].mxu0 %v841
        %v1796 = vpop.f32.mrb[0].mxu0
        %v1797 = vadd.f32 %v1636, %v1796
        %v1798 = vpop.f32.mrb[0].mxu0
        %v1799 = vpop.f32.mrb[0].mxu0
        %v1800 = vadd.f32 %v1639, %v1799
        %v1801 = vpop.f32.mrb[0].mxu0
        %1802 = vmatprep.mubr.bf16.mxu0 %v865
        %1803 = vmatmul.mubr.bf16.gmra.mrb[0].mxu0 %v844
        %v1804 = vpop.f32.mrb[0].mxu0
        %v1805 = vadd.f32 %v1644, %v1804
        %v1806 = vpop.f32.mrb[0].mxu0
        %v1807 = vpop.f32.mrb[0].mxu0
        %v1808 = vadd.f32 %v1647, %v1807
        %v1809 = vpop.f32.mrb[0].mxu0
        %1810 = vdwg.mxu0
        %1811 = vmatprep.subr.bf16.mxu0 0
        %1812 = vmatpush1.bf16.msra.mxu0 %v1377
        %1813 = vmatprep.subr.bf16.mxu0 0
        %1814 = vmatpush1.bf16.msra.mxu0 %v1378
        %1815 = vmatprep.subr.bf16.mxu0 0
        %1816 = vmatpush1.bf16.msra.mxu0 %v1379
        %1817 = vmatprep.subr.bf16.mxu0 0
        %1818 = vmatpush1.bf16.msra.mxu0 %v1380
        %1819 = vmatprep.subr.bf16.mxu0 0
        %1820 = vmatpush1.bf16.msra.mxu0 %v1381
        %1821 = vmatprep.subr.bf16.mxu0 0
        %1822 = vmatpush1.bf16.msra.mxu0 %v1382
        %1823 = vmatprep.subr.bf16.mxu0 0
        %1824 = vmatpush1.bf16.msra.mxu0 %v1383
        %1825 = vmatprep.subr.bf16.mxu0 0
        %1826 = vmatpush1.bf16.msra.mxu0 %v1384
        %1827 = vmatprep.subr.bf16.mxu0 0
        %1828 = vmatpush1.bf16.msra.mxu0 %v1385
        %1829 = vmatprep.subr.bf16.mxu0 0
        %1830 = vmatpush1.bf16.msra.mxu0 %v1386
        %1831 = vmatprep.subr.bf16.mxu0 0
        %1832 = vmatpush1.bf16.msra.mxu0 %v1387
        %1833 = vmatprep.subr.bf16.mxu0 0
        %1834 = vmatpush1.bf16.msra.mxu0 %v1388
        %1835 = vmatprep.subr.bf16.mxu0 0
        %1836 = vmatpush1.bf16.msra.mxu0 %v1389
        %1837 = vmatprep.subr.bf16.mxu0 0
        %1838 = vmatpush1.bf16.msra.mxu0 %v1390
        %1839 = vmatprep.subr.bf16.mxu0 0
        %1840 = vmatpush1.bf16.msra.mxu0 %v1391
        %1841 = vmatprep.subr.bf16.mxu0 0
        %1842 = vmatpush1.bf16.msra.mxu0 %v1392
        %1843 = vmatprep.mubr.bf16.mxu0 %v802
        %1844 = vmatmul.mubr.bf16.gmra.mrb[0].mxu0 %v611
        %v1845 = vpop.f32.mrb[0].mxu0
        %v1846 = vadd.f32 %v1685, %v1845
        %v1847 = vpop.f32.mrb[0].mxu0
        %v1848 = vpop.f32.mrb[0].mxu0
        %v1849 = vadd.f32 %v1688, %v1848
        %v1850 = vpop.f32.mrb[0].mxu0
        %1851 = vmatprep.mubr.bf16.mxu0 %v805
        %1852 = vmatmul.mubr.bf16.gmra.mrb[0].mxu0 %v623
        %v1853 = vpop.f32.mrb[0].mxu0
        %v1854 = vadd.f32 %v1693, %v1853
        %v1855 = vpop.f32.mrb[0].mxu0
        %v1856 = vpop.f32.mrb[0].mxu0
        %v1857 = vadd.f32 %v1696, %v1856
        %v1858 = vpop.f32.mrb[0].mxu0
        %1859 = vmatprep.mubr.bf16.mxu0 %v808
        %1860 = vmatmul.mubr.bf16.gmra.mrb[0].mxu0 %v635
        %v1861 = vpop.f32.mrb[0].mxu0
        %v1862 = vadd.f32 %v1701, %v1861
        %v1863 = vpop.f32.mrb[0].mxu0
        %v1864 = vpop.f32.mrb[0].mxu0
        %v1865 = vadd.f32 %v1704, %v1864
        %v1866 = vpop.f32.mrb[0].mxu0
        %1867 = vmatprep.mubr.bf16.mxu0 %v811
        %1868 = vmatmul.mubr.bf16.gmra.mrb[0].mxu0 %v647
        %v1869 = vpop.f32.mrb[0].mxu0
        %v1870 = vadd.f32 %v1709, %v1869
        %v1871 = vpop.f32.mrb[0].mxu0
        %v1872 = vpop.f32.mrb[0].mxu0
        %v1873 = vadd.f32 %v1712, %v1872
        %v1874 = vpop.f32.mrb[0].mxu0
        %1875 = vmatprep.mubr.bf16.mxu0 %v814
        %1876 = vmatmul.mubr.bf16.gmra.mrb[0].mxu0 %v659
        %v1877 = vpop.f32.mrb[0].mxu0
        %v1878 = vadd.f32 %v1717, %v1877
        %v1879 = vpop.f32.mrb[0].mxu0
        %v1880 = vpop.f32.mrb[0].mxu0
        %v1881 = vadd.f32 %v1720, %v1880
        %v1882 = vpop.f32.mrb[0].mxu0
        %1883 = vmatprep.mubr.bf16.mxu0 %v817
        %1884 = vmatmul.mubr.bf16.gmra.mrb[0].mxu0 %v671
        %v1885 = vpop.f32.mrb[0].mxu0
        %v1886 = vadd.f32 %v1725, %v1885
        %v1887 = vpop.f32.mrb[0].mxu0
        %v1888 = vpop.f32.mrb[0].mxu0
        %v1889 = vadd.f32 %v1728, %v1888
        %v1890 = vpop.f32.mrb[0].mxu0
        %1891 = vmatprep.mubr.bf16.mxu0 %v820
        %1892 = vmatmul.mubr.bf16.gmra.mrb[0].mxu0 %v683
        %v1893 = vpop.f32.mrb[0].mxu0
        %v1894 = vadd.f32 %v1733, %v1893
        %v1895 = vpop.f32.mrb[0].mxu0
        %v1896 = vpop.f32.mrb[0].mxu0
        %v1897 = vadd.f32 %v1736, %v1896
        %v1898 = vpop.f32.mrb[0].mxu0
        %1899 = vmatprep.mubr.bf16.mxu0 %v823
        %1900 = vmatmul.mubr.bf16.gmra.mrb[0].mxu0 %v695
        %v1901 = vpop.f32.mrb[0].mxu0
        %v1902 = vadd.f32 %v1741, %v1901
        %v1903 = vpop.f32.mrb[0].mxu0
        %v1904 = vpop.f32.mrb[0].mxu0
        %v1905 = vadd.f32 %v1744, %v1904
        %v1906 = vpop.f32.mrb[0].mxu0
        %1907 = vmatprep.mubr.bf16.mxu0 %v826
        %1908 = vmatmul.mubr.bf16.gmra.mrb[0].mxu0 %v707
        %v1909 = vpop.f32.mrb[0].mxu0
        %v1910 = vadd.f32 %v1749, %v1909
        %v1911 = vpop.f32.mrb[0].mxu0
        %v1912 = vpop.f32.mrb[0].mxu0
        %v1913 = vadd.f32 %v1752, %v1912
        %v1914 = vpop.f32.mrb[0].mxu0
        %1915 = vmatprep.mubr.bf16.mxu0 %v829
        %1916 = vmatmul.mubr.bf16.gmra.mrb[0].mxu0 %v719
        %v1917 = vpop.f32.mrb[0].mxu0
        %v1918 = vadd.f32 %v1757, %v1917
        %v1919 = vpop.f32.mrb[0].mxu0
        %v1920 = vpop.f32.mrb[0].mxu0
        %v1921 = vadd.f32 %v1760, %v1920
        %v1922 = vpop.f32.mrb[0].mxu0
        %1923 = vmatprep.mubr.bf16.mxu0 %v832
        %1924 = vmatmul.mubr.bf16.gmra.mrb[0].mxu0 %v731
        %v1925 = vpop.f32.mrb[0].mxu0
        %v1926 = vadd.f32 %v1765, %v1925
        %v1927 = vpop.f32.mrb[0].mxu0
        %v1928 = vpop.f32.mrb[0].mxu0
        %v1929 = vadd.f32 %v1768, %v1928
        %v1930 = vpop.f32.mrb[0].mxu0
        %1931 = vmatprep.mubr.bf16.mxu0 %v835
        %1932 = vmatmul.mubr.bf16.gmra.mrb[0].mxu0 %v743
        %v1933 = vpop.f32.mrb[0].mxu0
        %v1934 = vadd.f32 %v1773, %v1933
        %v1935 = vpop.f32.mrb[0].mxu0
        %v1936 = vpop.f32.mrb[0].mxu0
        %v1937 = vadd.f32 %v1776, %v1936
        %v1938 = vpop.f32.mrb[0].mxu0
        %1939 = vmatprep.mubr.bf16.mxu0 %v838
        %1940 = vmatmul.mubr.bf16.gmra.mrb[0].mxu0 %v755
        %v1941 = vpop.f32.mrb[0].mxu0
        %v1942 = vadd.f32 %v1781, %v1941
        %v1943 = vpop.f32.mrb[0].mxu0
        %v1944 = vpop.f32.mrb[0].mxu0
        %v1945 = vadd.f32 %v1784, %v1944
        %v1946 = vpop.f32.mrb[0].mxu0
        %1947 = vmatprep.mubr.bf16.mxu0 %v841
        %1948 = vmatmul.mubr.bf16.gmra.mrb[0].mxu0 %v767
        %v1949 = vpop.f32.mrb[0].mxu0
        %v1950 = vadd.f32 %v1789, %v1949
        %v1951 = vpop.f32.mrb[0].mxu0
        %v1952 = vpop.f32.mrb[0].mxu0
        %v1953 = vadd.f32 %v1792, %v1952
        %v1954 = vpop.f32.mrb[0].mxu0
        %1955 = vmatprep.mubr.bf16.mxu0 %v844
        %1956 = vmatmul.mubr.bf16.gmra.mrb[0].mxu0 %v779
        %v1957 = vpop.f32.mrb[0].mxu0
        %v1958 = vadd.f32 %v1797, %v1957
        %v1959 = vpop.f32.mrb[0].mxu0
        %v1960 = vpop.f32.mrb[0].mxu0
        %v1961 = vadd.f32 %v1800, %v1960
        %v1962 = vpop.f32.mrb[0].mxu0
        %1963 = vmatprep.mubr.bf16.mxu0 %v885
        %1964 = vmatmul.mubr.bf16.gmra.mrb[0].mxu0 %v881
        %v1965 = vpop.f32.mrb[0].mxu0
        %v1966 = vadd.f32 %v1805, %v1965
        %v1967 = vpop.f32.mrb[0].mxu0
        %v1968 = vpop.f32.mrb[0].mxu0
        %v1969 = vadd.f32 %v1808, %v1968
        %v1970 = vpop.f32.mrb[0].mxu0
        %1971 = vdwg.mxu0
        %1972 = vmatprep.subr.bf16.mxu0 0
        %1973 = vmatpush1.bf16.msra.mxu0 %v1393
        %1974 = vmatprep.subr.bf16.mxu0 0
        %1975 = vmatpush1.bf16.msra.mxu0 %v1394
        %1976 = vmatprep.subr.bf16.mxu0 0
        %1977 = vmatpush1.bf16.msra.mxu0 %v1395
        %1978 = vmatprep.subr.bf16.mxu0 0
        %1979 = vmatpush1.bf16.msra.mxu0 %v1396
        %1980 = vmatprep.subr.bf16.mxu0 0
        %1981 = vmatpush1.bf16.msra.mxu0 %v1397
        %1982 = vmatprep.subr.bf16.mxu0 0
        %1983 = vmatpush1.bf16.msra.mxu0 %v1398
        %1984 = vmatprep.subr.bf16.mxu0 0
        %1985 = vmatpush1.bf16.msra.mxu0 %v1399
        %1986 = vmatprep.subr.bf16.mxu0 0
        %1987 = vmatpush1.bf16.msra.mxu0 %v1400
        %1988 = vmatprep.subr.bf16.mxu0 0
        %1989 = vmatpush1.bf16.msra.mxu0 %v1401
        %1990 = vmatprep.subr.bf16.mxu0 0
        %1991 = vmatpush1.bf16.msra.mxu0 %v1402
        %1992 = vmatprep.subr.bf16.mxu0 0
        %1993 = vmatpush1.bf16.msra.mxu0 %v1403
        %1994 = vmatprep.subr.bf16.mxu0 0
        %1995 = vmatpush1.bf16.msra.mxu0 %v1404
        %1996 = vmatprep.subr.bf16.mxu0 0
        %1997 = vmatpush1.bf16.msra.mxu0 %v1405
        %1998 = vmatprep.subr.bf16.mxu0 0
        %1999 = vmatpush1.bf16.msra.mxu0 %v1406
        %2000 = vmatprep.subr.bf16.mxu0 0
        %2001 = vmatpush1.bf16.msra.mxu0 %v1407
        %2002 = vmatprep.subr.bf16.mxu0 0
        %2003 = vmatpush1.bf16.msra.mxu0 %v1408
        %2004 = vmatprep.mubr.bf16.mxu0 %v623
        %2005 = vmatmul.mubr.bf16.gmra.mrb[0].mxu0 %v509
        %v2006 = vpop.f32.mrb[0].mxu0
        %v2007 = vadd.f32 %v1846, %v2006
        %v2008 = vpop.f32.mrb[0].mxu0
        %v2009 = vpop.f32.mrb[0].mxu0
        %v2010 = vadd.f32 %v1849, %v2009
        %v2011 = vpop.f32.mrb[0].mxu0
        %2012 = vmatprep.mubr.bf16.mxu0 %v635
        %2013 = vmatmul.mubr.bf16.gmra.mrb[0].mxu0 %v510
        %v2014 = vpop.f32.mrb[0].mxu0
        %v2015 = vadd.f32 %v1854, %v2014
        %v2016 = vpop.f32.mrb[0].mxu0
        %v2017 = vpop.f32.mrb[0].mxu0
        %v2018 = vadd.f32 %v1857, %v2017
        %v2019 = vpop.f32.mrb[0].mxu0
        %2020 = vmatprep.mubr.bf16.mxu0 %v647
        %2021 = vmatmul.mubr.bf16.gmra.mrb[0].mxu0 %v511
        %v2022 = vpop.f32.mrb[0].mxu0
        %v2023 = vadd.f32 %v1862, %v2022
        %v2024 = vpop.f32.mrb[0].mxu0
        %v2025 = vpop.f32.mrb[0].mxu0
        %v2026 = vadd.f32 %v1865, %v2025
        %v2027 = vpop.f32.mrb[0].mxu0
        %2028 = vmatprep.mubr.bf16.mxu0 %v659
        %2029 = vmatmul.mubr.bf16.gmra.mrb[0].mxu0 %v512
        %v2030 = vpop.f32.mrb[0].mxu0
        %v2031 = vadd.f32 %v1870, %v2030
        %v2032 = vpop.f32.mrb[0].mxu0
        %v2033 = vpop.f32.mrb[0].mxu0
        %v2034 = vadd.f32 %v1873, %v2033
        %v2035 = vpop.f32.mrb[0].mxu0
        %2036 = vmatprep.mubr.bf16.mxu0 %v671
        %2037 = vmatmul.mubr.bf16.gmra.mrb[0].mxu0 %v513
        %v2038 = vpop.f32.mrb[0].mxu0
        %v2039 = vadd.f32 %v1878, %v2038
        %v2040 = vpop.f32.mrb[0].mxu0
        %v2041 = vpop.f32.mrb[0].mxu0
        %v2042 = vadd.f32 %v1881, %v2041
        %v2043 = vpop.f32.mrb[0].mxu0
        %2044 = vmatprep.mubr.bf16.mxu0 %v683
        %2045 = vmatmul.mubr.bf16.gmra.mrb[0].mxu0 %v514
        %v2046 = vpop.f32.mrb[0].mxu0
        %v2047 = vadd.f32 %v1886, %v2046
        %v2048 = vpop.f32.mrb[0].mxu0
        %v2049 = vpop.f32.mrb[0].mxu0
        %v2050 = vadd.f32 %v1889, %v2049
        %v2051 = vpop.f32.mrb[0].mxu0
        %2052 = vmatprep.mubr.bf16.mxu0 %v695
        %2053 = vmatmul.mubr.bf16.gmra.mrb[0].mxu0 %v515
        %v2054 = vpop.f32.mrb[0].mxu0
        %v2055 = vadd.f32 %v1894, %v2054
        %v2056 = vpop.f32.mrb[0].mxu0
        %v2057 = vpop.f32.mrb[0].mxu0
        %v2058 = vadd.f32 %v1897, %v2057
        %v2059 = vpop.f32.mrb[0].mxu0
        %2060 = vmatprep.mubr.bf16.mxu0 %v707
        %2061 = vmatmul.mubr.bf16.gmra.mrb[0].mxu0 %v516
        %v2062 = vpop.f32.mrb[0].mxu0
        %v2063 = vadd.f32 %v1902, %v2062
        %v2064 = vpop.f32.mrb[0].mxu0
        %v2065 = vpop.f32.mrb[0].mxu0
        %v2066 = vadd.f32 %v1905, %v2065
        %v2067 = vpop.f32.mrb[0].mxu0
        %2068 = vmatprep.mubr.bf16.mxu0 %v719
        %2069 = vmatmul.mubr.bf16.gmra.mrb[0].mxu0 %v517
        %v2070 = vpop.f32.mrb[0].mxu0
        %v2071 = vadd.f32 %v1910, %v2070
        %v2072 = vpop.f32.mrb[0].mxu0
        %v2073 = vpop.f32.mrb[0].mxu0
        %v2074 = vadd.f32 %v1913, %v2073
        %v2075 = vpop.f32.mrb[0].mxu0
        %2076 = vmatprep.mubr.bf16.mxu0 %v731
        %2077 = vmatmul.mubr.bf16.gmra.mrb[0].mxu0 %v518
        %v2078 = vpop.f32.mrb[0].mxu0
        %v2079 = vadd.f32 %v1918, %v2078
        %v2080 = vpop.f32.mrb[0].mxu0
        %v2081 = vpop.f32.mrb[0].mxu0
        %v2082 = vadd.f32 %v1921, %v2081
        %v2083 = vpop.f32.mrb[0].mxu0
        %2084 = vmatprep.mubr.bf16.mxu0 %v743
        %2085 = vmatmul.mubr.bf16.gmra.mrb[0].mxu0 %v519
        %v2086 = vpop.f32.mrb[0].mxu0
        %v2087 = vadd.f32 %v1926, %v2086
        %v2088 = vpop.f32.mrb[0].mxu0
        %v2089 = vpop.f32.mrb[0].mxu0
        %v2090 = vadd.f32 %v1929, %v2089
        %v2091 = vpop.f32.mrb[0].mxu0
        %2092 = vmatprep.mubr.bf16.mxu0 %v755
        %2093 = vmatmul.mubr.bf16.gmra.mrb[0].mxu0 %v520
        %v2094 = vpop.f32.mrb[0].mxu0
        %v2095 = vadd.f32 %v1934, %v2094
        %v2096 = vpop.f32.mrb[0].mxu0
        %v2097 = vpop.f32.mrb[0].mxu0
        %v2098 = vadd.f32 %v1937, %v2097
        %v2099 = vpop.f32.mrb[0].mxu0
        %2100 = vmatprep.mubr.bf16.mxu0 %v767
        %2101 = vmatmul.mubr.bf16.gmra.mrb[0].mxu0 %v521
        %v2102 = vpop.f32.mrb[0].mxu0
        %v2103 = vadd.f32 %v1942, %v2102
        %v2104 = vpop.f32.mrb[0].mxu0
        %v2105 = vpop.f32.mrb[0].mxu0
        %v2106 = vadd.f32 %v1945, %v2105
        %v2107 = vpop.f32.mrb[0].mxu0
        %2108 = vmatprep.mubr.bf16.mxu0 %v779
        %2109 = vmatmul.mubr.bf16.gmra.mrb[0].mxu0 %v522
        %v2110 = vpop.f32.mrb[0].mxu0
        %v2111 = vadd.f32 %v1950, %v2110
        %v2112 = vpop.f32.mrb[0].mxu0
        %v2113 = vpop.f32.mrb[0].mxu0
        %v2114 = vadd.f32 %v1953, %v2113
        %v2115 = vpop.f32.mrb[0].mxu0
        %2116 = vmatprep.mubr.bf16.mxu0 %v881
        %2117 = vmatmul.mubr.bf16.gmra.mrb[0].mxu0 %v865
        %v2118 = vpop.f32.mrb[0].mxu0
        %v2119 = vadd.f32 %v1958, %v2118
        %v2120 = vpop.f32.mrb[0].mxu0
        %v2121 = vpop.f32.mrb[0].mxu0
        %v2122 = vadd.f32 %v1961, %v2121
        %v2123 = vpop.f32.mrb[0].mxu0
        %2124 = vmatprep.mubr.bf16.mxu0 %v907
        %2125 = vmatmul.mubr.bf16.gmra.mrb[0].mxu0 %v891
        %v2126 = vpop.f32.mrb[0].mxu0
        %v2127 = vadd.f32 %v1966, %v2126
        %v2128 = vpop.f32.mrb[0].mxu0
        %v2129 = vpop.f32.mrb[0].mxu0
        %v2130 = vadd.f32 %v1969, %v2129
        %v2131 = vpop.f32.mrb[0].mxu0
        %2132 = vdwg.mxu0
        %2133 = vmatprep.subr.bf16.mxu0 0
        %2134 = vmatpush1.bf16.msra.mxu0 %v1409
        %2135 = vmatprep.subr.bf16.mxu0 0
        %2136 = vmatpush1.bf16.msra.mxu0 %v1410
        %2137 = vmatprep.subr.bf16.mxu0 0
        %2138 = vmatpush1.bf16.msra.mxu0 %v1411
        %2139 = vmatprep.subr.bf16.mxu0 0
        %2140 = vmatpush1.bf16.msra.mxu0 %v1412
        %2141 = vmatprep.subr.bf16.mxu0 0
        %2142 = vmatpush1.bf16.msra.mxu0 %v1413
        %2143 = vmatprep.subr.bf16.mxu0 0
        %2144 = vmatpush1.bf16.msra.mxu0 %v1414
        %2145 = vmatprep.subr.bf16.mxu0 0
        %2146 = vmatpush1.bf16.msra.mxu0 %v1415
        %2147 = vmatprep.subr.bf16.mxu0 0
        %2148 = vmatpush1.bf16.msra.mxu0 %v1416
        %2149 = vmatprep.subr.bf16.mxu0 0
        %2150 = vmatpush1.bf16.msra.mxu0 0
        %2151 = vmatprep.subr.bf16.mxu0 0
        %2152 = vmatpush1.bf16.msra.mxu0 0
        %2153 = vmatprep.subr.bf16.mxu0 0
        %2154 = vmatpush1.bf16.msra.mxu0 0
        %2155 = vmatprep.subr.bf16.mxu0 0
        %2156 = vmatpush1.bf16.msra.mxu0 0
        %2157 = vmatprep.subr.bf16.mxu0 0
        %2158 = vmatpush1.bf16.msra.mxu0 0
        %2159 = vmatprep.subr.bf16.mxu0 0
        %2160 = vmatpush1.bf16.msra.mxu0 0
        %2161 = vmatprep.subr.bf16.mxu0 0
        %2162 = vmatpush1.bf16.msra.mxu0 0
        %2163 = vmatprep.subr.bf16.mxu0 0
        %2164 = vmatpush1.bf16.msra.mxu0 0
        %2165 = vmatprep.mubr.bf16.mxu0 0
        %2166 = vmatmul.mubr.bf16.gmra.mrb[0].mxu0 %v805
        %v2167 = vpop.f32.mrb[0].mxu0
        %v2168 = vadd.f32 %v2007, %v2167
        %v2169 = vpop.f32.mrb[0].mxu0
        %v2170 = vpop.f32.mrb[0].mxu0
        %v2171 = vadd.f32 %v2010, %v2170
        %v2172 = vpop.f32.mrb[0].mxu0
        %2173 = vmatprep.mubr.bf16.mxu0 0
        %2174 = vmatmul.mubr.bf16.gmra.mrb[0].mxu0 %v808
        %v2175 = vpop.f32.mrb[0].mxu0
        %v2176 = vadd.f32 %v2015, %v2175
        %v2177 = vpop.f32.mrb[0].mxu0
        %v2178 = vpop.f32.mrb[0].mxu0
        %v2179 = vadd.f32 %v2018, %v2178
        %v2180 = vpop.f32.mrb[0].mxu0
        %2181 = vmatprep.mubr.bf16.mxu0 0
        %2182 = vmatmul.mubr.bf16.gmra.mrb[0].mxu0 %v811
        %v2183 = vpop.f32.mrb[0].mxu0
        %v2184 = vadd.f32 %v2023, %v2183
        %v2185 = vpop.f32.mrb[0].mxu0
        %v2186 = vpop.f32.mrb[0].mxu0
        %v2187 = vadd.f32 %v2026, %v2186
        %v2188 = vpop.f32.mrb[0].mxu0
        %2189 = vmatprep.mubr.bf16.mxu0 0
        %2190 = vmatmul.mubr.bf16.gmra.mrb[0].mxu0 %v814
        %v2191 = vpop.f32.mrb[0].mxu0
        %v2192 = vadd.f32 %v2031, %v2191
        %v2193 = vpop.f32.mrb[0].mxu0
        %v2194 = vpop.f32.mrb[0].mxu0
        %v2195 = vadd.f32 %v2034, %v2194
        %v2196 = vpop.f32.mrb[0].mxu0
        %2197 = vmatprep.mubr.bf16.mxu0 0
        %2198 = vmatmul.mubr.bf16.gmra.mrb[0].mxu0 %v817
        %v2199 = vpop.f32.mrb[0].mxu0
        %v2200 = vadd.f32 %v2039, %v2199
        %v2201 = vpop.f32.mrb[0].mxu0
        %v2202 = vpop.f32.mrb[0].mxu0
        %v2203 = vadd.f32 %v2042, %v2202
        %v2204 = vpop.f32.mrb[0].mxu0
        %2205 = vmatprep.mubr.bf16.mxu0 0
        %2206 = vmatmul.mubr.bf16.gmra.mrb[0].mxu0 %v820
        %v2207 = vpop.f32.mrb[0].mxu0
        %v2208 = vadd.f32 %v2047, %v2207
        %v2209 = vpop.f32.mrb[0].mxu0
        %v2210 = vpop.f32.mrb[0].mxu0
        %v2211 = vadd.f32 %v2050, %v2210
        %v2212 = vpop.f32.mrb[0].mxu0
        %2213 = vmatprep.mubr.bf16.mxu0 0
        %2214 = vmatmul.mubr.bf16.gmra.mrb[0].mxu0 %v823
        %v2215 = vpop.f32.mrb[0].mxu0
        %v2216 = vadd.f32 %v2055, %v2215
        %v2217 = vpop.f32.mrb[0].mxu0
        %v2218 = vpop.f32.mrb[0].mxu0
        %v2219 = vadd.f32 %v2058, %v2218
        %v2220 = vpop.f32.mrb[0].mxu0
        %2221 = vmatprep.mubr.bf16.mxu0 0
        %2222 = vmatmul.mubr.bf16.gmra.mrb[0].mxu0 %v826
        %v2223 = vpop.f32.mrb[0].mxu0
        %v2224 = vadd.f32 %v2063, %v2223
        %v2225 = vpop.f32.mrb[0].mxu0
        %v2226 = vpop.f32.mrb[0].mxu0
        %v2227 = vadd.f32 %v2066, %v2226
        %v2228 = vpop.f32.mrb[0].mxu0
        %2229 = vmatprep.mubr.bf16.mxu0 0
        %2230 = vmatmul.mubr.bf16.gmra.mrb[0].mxu0 %v829
        %v2231 = vpop.f32.mrb[0].mxu0
        %v2232 = vadd.f32 %v2071, %v2231
        %v2233 = vpop.f32.mrb[0].mxu0
        %v2234 = vpop.f32.mrb[0].mxu0
        %v2235 = vadd.f32 %v2074, %v2234
        %v2236 = vpop.f32.mrb[0].mxu0
        %2237 = vmatprep.mubr.bf16.mxu0 0
        %2238 = vmatmul.mubr.bf16.gmra.mrb[0].mxu0 %v832
        %v2239 = vpop.f32.mrb[0].mxu0
        %v2240 = vadd.f32 %v2079, %v2239
        %v2241 = vpop.f32.mrb[0].mxu0
        %v2242 = vpop.f32.mrb[0].mxu0
        %v2243 = vadd.f32 %v2082, %v2242
        %v2244 = vpop.f32.mrb[0].mxu0
        %2245 = vmatprep.mubr.bf16.mxu0 0
        %2246 = vmatmul.mubr.bf16.gmra.mrb[0].mxu0 %v835
        %v2247 = vpop.f32.mrb[0].mxu0
        %v2248 = vadd.f32 %v2087, %v2247
        %v2249 = vpop.f32.mrb[0].mxu0
        %v2250 = vpop.f32.mrb[0].mxu0
        %v2251 = vadd.f32 %v2090, %v2250
        %v2252 = vpop.f32.mrb[0].mxu0
        %2253 = vmatprep.mubr.bf16.mxu0 0
        %2254 = vmatmul.mubr.bf16.gmra.mrb[0].mxu0 %v838
        %v2255 = vpop.f32.mrb[0].mxu0
        %v2256 = vadd.f32 %v2095, %v2255
        %v2257 = vpop.f32.mrb[0].mxu0
        %v2258 = vpop.f32.mrb[0].mxu0
        %v2259 = vadd.f32 %v2098, %v2258
        %v2260 = vpop.f32.mrb[0].mxu0
        %2261 = vmatprep.mubr.bf16.mxu0 0
        %2262 = vmatmul.mubr.bf16.gmra.mrb[0].mxu0 %v841
        %v2263 = vpop.f32.mrb[0].mxu0
        %v2264 = vadd.f32 %v2103, %v2263
        %v2265 = vpop.f32.mrb[0].mxu0
        %v2266 = vpop.f32.mrb[0].mxu0
        %v2267 = vadd.f32 %v2106, %v2266
        %v2268 = vpop.f32.mrb[0].mxu0
        %2269 = vmatprep.mubr.bf16.mxu0 0
        %2270 = vmatmul.mubr.bf16.gmra.mrb[0].mxu0 %v844
        %v2271 = vpop.f32.mrb[0].mxu0
        %v2272 = vadd.f32 %v2111, %v2271
        %v2273 = vpop.f32.mrb[0].mxu0
        %v2274 = vpop.f32.mrb[0].mxu0
        %v2275 = vadd.f32 %v2114, %v2274
        %v2276 = vpop.f32.mrb[0].mxu0
        %2277 = vmatprep.mubr.bf16.mxu0 0
        %2278 = vmatmul.mubr.bf16.gmra.mrb[0].mxu0 %v885
        %v2279 = vpop.f32.mrb[0].mxu0
        %v2280 = vadd.f32 %v2119, %v2279
        %v2281 = vpop.f32.mrb[0].mxu0
        %v2282 = vpop.f32.mrb[0].mxu0
        %v2283 = vadd.f32 %v2122, %v2282
        %v2284 = vpop.f32.mrb[0].mxu0
        %2285 = vmatprep.mubr.bf16.mxu0 0
        %2286 = vmatmul.mubr.bf16.gmra.mrb[0].mxu0 %v911
        %v2287 = vpop.f32.mrb[0].mxu0
        %v2288 = vadd.f32 %v2127, %v2287
        %v2289 = vpop.f32.mrb[0].mxu0
        %v2290 = vpop.f32.mrb[0].mxu0
        %v2291 = vadd.f32 %v2130, %v2290
        %v2292 = vpop.f32.mrb[0].mxu0
        %2293 = vdwg.mxu0
        %2294 = vst [vmem:[%s332] sm:$0xff] %v2168
        %2295 = vst [vmem:[%s332 + $0x8] sm:$0xff] %v2171
        %2296 = vst [vmem:[%s332 + $0x10] sm:$0xff] %v2176
        %2297 = vst [vmem:[%s332 + $0x18] sm:$0xff] %v2179
        %2298 = vst [vmem:[%s332 + $0x20] sm:$0xff] %v2184
        %2299 = vst [vmem:[%s332 + $0x28] sm:$0xff] %v2187
        %2300 = vst [vmem:[%s332 + $0x30] sm:$0xff] %v2192
        %2301 = vst [vmem:[%s332 + $0x38] sm:$0xff] %v2195
        %2302 = vst [vmem:[%s332 + $0x40] sm:$0xff] %v2200
        %2303 = vst [vmem:[%s332 + $0x48] sm:$0xff] %v2203
        %2304 = vst [vmem:[%s332 + $0x50] sm:$0xff] %v2208
        %2305 = vst [vmem:[%s332 + $0x58] sm:$0xff] %v2211
        %2306 = vst [vmem:[%s332 + $0x60] sm:$0xff] %v2216
        %2307 = vst [vmem:[%s332 + $0x68] sm:$0xff] %v2219
        %2308 = vst [vmem:[%s332 + $0x70] sm:$0xff] %v2224
        %2309 = vst [vmem:[%s332 + $0x78] sm:$0xff] %v2227
        %2310 = vst [vmem:[%s332 + $0x80] sm:$0xff] %v2232
        %2311 = vst [vmem:[%s332 + $0x88] sm:$0xff] %v2235
        %2312 = vst [vmem:[%s332 + $0x90] sm:$0xff] %v2240
        %2313 = vst [vmem:[%s332 + $0x98] sm:$0xff] %v2243
        %2314 = vst [vmem:[%s332 + $0xa0] sm:$0xff] %v2248
        %2315 = vst [vmem:[%s332 + $0xa8] sm:$0xff] %v2251
        %2316 = vst [vmem:[%s332 + $0xb0] sm:$0xff] %v2256
        %2317 = vst [vmem:[%s332 + $0xb8] sm:$0xff] %v2259
        %2318 = vst [vmem:[%s332 + $0xc0] sm:$0xff] %v2264
        %2319 = vst [vmem:[%s332 + $0xc8] sm:$0xff] %v2267
        %2320 = vst [vmem:[%s332 + $0xd0] sm:$0xff] %v2272
        %2321 = vst [vmem:[%s332 + $0xd8] sm:$0xff] %v2275
        %2322 = vst [vmem:[%s332 + $0xe0] sm:$0xff] %v2280
        %2323 = vst [vmem:[%s332 + $0xe8] sm:$0xff] %v2283
        %2324 = vst [vmem:[%s332 + $0xf0] sm:$0xff] %v2288
        %2325 = vst [vmem:[%s332 + $0xf8] sm:$0xff] %v2291
        %v2326 = vadd.f32 %v2168, %v2171
        %v2327 = vadd.f32 %v2326, %v2176
        %v2328 = vadd.f32 %v2327, %v2179
        %v2329 = vadd.f32 %v2328, %v2184
        %v2330 = vadd.f32 %v2329, %v2187
        %v2331 = vadd.f32 %v2330, %v2192
        %v2332 = vadd.f32 %v2331, %v2195
        %v2333 = vadd.f32 %v2332, %v2200
        %v2334 = vadd.f32 %v2333, %v2203
        %v2335 = vadd.f32 %v2334, %v2208
        %v2336 = vadd.f32 %v2335, %v2211
        %v2337 = vadd.f32 %v2336, %v2216
        %v2338 = vadd.f32 %v2337, %v2219
        %v2339 = vadd.f32 %v2338, %v2224
        %v2340 = vadd.f32 %v2339, %v2227
        %v2341 = vadd.f32 %v2340, %v2232
        %v2342 = vadd.f32 %v2341, %v2235
        %v2343 = vadd.f32 %v2342, %v2240
        %v2344 = vadd.f32 %v2343, %v2243
        %v2345 = vadd.f32 %v2344, %v2248
        %v2346 = vadd.f32 %v2345, %v2251
        %v2347 = vadd.f32 %v2346, %v2256
        %v2348 = vadd.f32 %v2347, %v2259
        %v2349 = vadd.f32 %v2348, %v2264
        %v2350 = vadd.f32 %v2349, %v2267
        %v2351 = vadd.f32 %v2350, %v2272
        %v2352 = vadd.f32 %v2351, %v2275
        %v2353 = vadd.f32 %v2352, %v2280
        %v2354 = vadd.f32 %v2353, %v2283
        %v2355 = vadd.f32 %v2354, %v2288
        %v2356 = vadd.f32 %v2355, %v2291
        %v2357 = vrot.slane %v2356, 4
        %v2358 = vadd.f32 %v2356, %v2357
        %v2359 = vrot.slane %v2358, 2
        %v2360 = vadd.f32 %v2358, %v2359
        %v2361 = vrot.slane %v2360, 1
        %v2362 = vadd.f32 %v2360, %v2361
        %v2363 = vmul.f32 %v2168, %v2168
        %v2364 = vmul.f32 %v2171, %v2171
        %v2365 = vmul.f32 %v2176, %v2176
        %v2366 = vmul.f32 %v2179, %v2179
        %v2367 = vmul.f32 %v2184, %v2184
        %v2368 = vmul.f32 %v2187, %v2187
        %v2369 = vmul.f32 %v2192, %v2192
        %v2370 = vmul.f32 %v2195, %v2195
        %v2371 = vmul.f32 %v2200, %v2200
        %v2372 = vmul.f32 %v2203, %v2203
        %v2373 = vmul.f32 %v2208, %v2208
        %v2374 = vmul.f32 %v2211, %v2211
        %v2375 = vmul.f32 %v2216, %v2216
        %v2376 = vmul.f32 %v2219, %v2219
        %v2377 = vmul.f32 %v2224, %v2224
        %v2378 = vmul.f32 %v2227, %v2227
        %v2379 = vmul.f32 %v2232, %v2232
        %v2380 = vmul.f32 %v2235, %v2235
        %v2381 = vmul.f32 %v2240, %v2240
        %v2382 = vmul.f32 %v2243, %v2243
        %v2383 = vmul.f32 %v2248, %v2248
        %v2384 = vmul.f32 %v2251, %v2251
        %v2385 = vmul.f32 %v2256, %v2256
        %v2386 = vmul.f32 %v2259, %v2259
        %v2387 = vmul.f32 %v2264, %v2264
        %v2388 = vmul.f32 %v2267, %v2267
        %v2389 = vmul.f32 %v2272, %v2272
        %v2390 = vmul.f32 %v2275, %v2275
        %v2391 = vmul.f32 %v2280, %v2280
        %v2392 = vmul.f32 %v2283, %v2283
        %v2393 = vmul.f32 %v2288, %v2288
        %v2394 = vmul.f32 %v2291, %v2291
        %v2395 = vadd.f32 %v2363, %v2364
        %v2396 = vadd.f32 %v2395, %v2365
        %v2397 = vadd.f32 %v2396, %v2366
        %v2398 = vadd.f32 %v2397, %v2367
        %v2399 = vadd.f32 %v2398, %v2368
        %v2400 = vadd.f32 %v2399, %v2369
        %v2401 = vadd.f32 %v2400, %v2370
        %v2402 = vadd.f32 %v2401, %v2371
        %v2403 = vadd.f32 %v2402, %v2372
        %v2404 = vadd.f32 %v2403, %v2373
        %v2405 = vadd.f32 %v2404, %v2374
        %v2406 = vadd.f32 %v2405, %v2375
        %v2407 = vadd.f32 %v2406, %v2376
        %v2408 = vadd.f32 %v2407, %v2377
        %v2409 = vadd.f32 %v2408, %v2378
        %v2410 = vadd.f32 %v2409, %v2379
        %v2411 = vadd.f32 %v2410, %v2380
        %v2412 = vadd.f32 %v2411, %v2381
        %v2413 = vadd.f32 %v2412, %v2382
        %v2414 = vadd.f32 %v2413, %v2383
        %v2415 = vadd.f32 %v2414, %v2384
        %v2416 = vadd.f32 %v2415, %v2385
        %v2417 = vadd.f32 %v2416, %v2386
        %v2418 = vadd.f32 %v2417, %v2387
        %v2419 = vadd.f32 %v2418, %v2388
        %v2420 = vadd.f32 %v2419, %v2389
        %v2421 = vadd.f32 %v2420, %v2390
        %v2422 = vadd.f32 %v2421, %v2391
        %v2423 = vadd.f32 %v2422, %v2392
        %v2424 = vadd.f32 %v2423, %v2393
        %v2425 = vadd.f32 %v2424, %v2394
        %v2426 = vrot.slane %v2425, 4
        %v2427 = vadd.f32 %v2425, %v2426
        %v2428 = vrot.slane %v2427, 2
        %v2429 = vadd.f32 %v2427, %v2428
        %v2430 = vrot.slane %v2429, 1
        %v2431 = vadd.f32 %v2429, %v2430
        %v2432 = vld [vmem:[%s3] sm:$0xf]
        %v2433 = vld [vmem:[%s3 + $0x4] sm:$0xf]
        %v2434 = vld [vmem:[%s3 + $0x8] sm:$0xf]
        %v2435 = vld [vmem:[%s3 + $0xc] sm:$0xf]
        %v2436 = vld [vmem:[%s3 + $0x10] sm:$0xf]
        %v2437 = vld [vmem:[%s3 + $0x14] sm:$0xf]
        %v2438 = vld [vmem:[%s3 + $0x18] sm:$0xf]
        %v2439 = vld [vmem:[%s3 + $0x1c] sm:$0xf]
        %v2440 = vld [vmem:[%s3 + $0x20] sm:$0xf]
        %v2441 = vld [vmem:[%s3 + $0x24] sm:$0xf]
        %v2442 = vld [vmem:[%s3 + $0x28] sm:$0xf]
        %v2443 = vld [vmem:[%s3 + $0x2c] sm:$0xf]
        %v2444 = vld [vmem:[%s3 + $0x30] sm:$0xf]
        %v2445 = vld [vmem:[%s3 + $0x34] sm:$0xf]
        %v2446 = vld [vmem:[%s3 + $0x38] sm:$0xf]
        %v2447 = vld [vmem:[%s3 + $0x3c] sm:$0xf]
        %v2464 = vunpack.c.l.b16 %v2432
        %v2465 = vunpack.c.l.b16 %v2433
        %v2466 = vunpack.c.l.b16 %v2434
        %v2467 = vunpack.c.l.b16 %v2435
        %v2468 = vunpack.c.l.b16 %v2436
        %v2469 = vunpack.c.l.b16 %v2437
        %v2470 = vunpack.c.l.b16 %v2438
        %v2471 = vunpack.c.l.b16 %v2439
        %v2472 = vunpack.c.l.b16 %v2440
        %v2473 = vunpack.c.l.b16 %v2441
        %v2474 = vunpack.c.l.b16 %v2442
        %v2475 = vunpack.c.l.b16 %v2443
        %v2476 = vunpack.c.l.b16 %v2444
        %v2477 = vunpack.c.l.b16 %v2445
        %v2478 = vunpack.c.l.b16 %v2446
        %v2479 = vunpack.c.l.b16 %v2447
        %v2480 = vpack.c.b16 %v2465, %v2464
        %v2481 = vpack.c.b16 %v2467, %v2466
        %v2482 = vpack.c.b16 %v2469, %v2468
        %v2483 = vpack.c.b16 %v2471, %v2470
        %v2484 = vpack.c.b16 %v2473, %v2472
        %v2485 = vpack.c.b16 %v2475, %v2474
        %v2486 = vpack.c.b16 %v2477, %v2476
        %v2487 = vpack.c.b16 %v2479, %v2478
        %2496 = vmatprep.subr.bf16.mxu0 0
        %2497 = vmatpush1.bf16.msra.mxu0 %v2480
        %2498 = vmatprep.subr.bf16.mxu0 0
        %2499 = vmatpush1.bf16.msra.mxu0 %v2481
        %2500 = vmatprep.subr.bf16.mxu0 0
        %2501 = vmatpush1.bf16.msra.mxu0 %v2482
        %2502 = vmatprep.subr.bf16.mxu0 0
        %2503 = vmatpush1.bf16.msra.mxu0 %v2483
        %2504 = vmatprep.subr.bf16.mxu0 0
        %2505 = vmatpush1.bf16.msra.mxu0 %v2484
        %2506 = vmatprep.subr.bf16.mxu0 0
        %2507 = vmatpush1.bf16.msra.mxu0 %v2485
        %2508 = vmatprep.subr.bf16.mxu0 0
        %2509 = vmatpush1.bf16.msra.mxu0 %v2486
        %2510 = vmatprep.subr.bf16.mxu0 0
        %2511 = vmatpush1.bf16.msra.mxu0 %v2487
        %2512 = vmatprep.subr.bf16.mxu0 0
        %2513 = vmatpush1.bf16.msra.mxu0 0
        %2514 = vmatprep.subr.bf16.mxu0 0
        %2515 = vmatpush1.bf16.msra.mxu0 0
        %2516 = vmatprep.subr.bf16.mxu0 0
        %2517 = vmatpush1.bf16.msra.mxu0 0
        %2518 = vmatprep.subr.bf16.mxu0 0
        %2519 = vmatpush1.bf16.msra.mxu0 0
        %2520 = vmatprep.subr.bf16.mxu0 0
        %2521 = vmatpush1.bf16.msra.mxu0 0
        %2522 = vmatprep.subr.bf16.mxu0 0
        %2523 = vmatpush1.bf16.msra.mxu0 0
        %2524 = vmatprep.subr.bf16.mxu0 0
        %2525 = vmatpush1.bf16.msra.mxu0 0
        %2526 = vmatprep.subr.bf16.mxu0 0
        %2527 = vmatpush1.bf16.msra.mxu0 0
        %2528 = vmatprep.mubr.bf16.mxu0 0
        %2529 = vmatmul.mubr.bf16.gmra.mrb[0].mxu0 %v611
        %v2530 = vpop.f32.mrb[0].mxu0
        %v2531 = vadd.f32 0.0, %v2530
        %v2532 = vpop.f32.mrb[0].mxu0
        %v2533 = vpop.f32.mrb[0].mxu0
        %v2534 = vadd.f32 0.0, %v2533
        %v2535 = vpop.f32.mrb[0].mxu0
        %2536 = vmatprep.mubr.bf16.mxu0 0
        %2537 = vmatmul.mubr.bf16.gmra.mrb[0].mxu0 %v623
        %v2538 = vpop.f32.mrb[0].mxu0
        %v2539 = vadd.f32 0.0, %v2538
        %v2540 = vpop.f32.mrb[0].mxu0
        %v2541 = vpop.f32.mrb[0].mxu0
        %v2542 = vadd.f32 0.0, %v2541
        %v2543 = vpop.f32.mrb[0].mxu0
        %2544 = vmatprep.mubr.bf16.mxu0 0
        %2545 = vmatmul.mubr.bf16.gmra.mrb[0].mxu0 %v635
        %v2546 = vpop.f32.mrb[0].mxu0
        %v2547 = vadd.f32 0.0, %v2546
        %v2548 = vpop.f32.mrb[0].mxu0
        %v2549 = vpop.f32.mrb[0].mxu0
        %v2550 = vadd.f32 0.0, %v2549
        %v2551 = vpop.f32.mrb[0].mxu0
        %2552 = vmatprep.mubr.bf16.mxu0 0
        %2553 = vmatmul.mubr.bf16.gmra.mrb[0].mxu0 %v647
        %v2554 = vpop.f32.mrb[0].mxu0
        %v2555 = vadd.f32 0.0, %v2554
        %v2556 = vpop.f32.mrb[0].mxu0
        %v2557 = vpop.f32.mrb[0].mxu0
        %v2558 = vadd.f32 0.0, %v2557
        %v2559 = vpop.f32.mrb[0].mxu0
        %2560 = vmatprep.mubr.bf16.mxu0 0
        %2561 = vmatmul.mubr.bf16.gmra.mrb[0].mxu0 %v659
        %v2562 = vpop.f32.mrb[0].mxu0
        %v2563 = vadd.f32 0.0, %v2562
        %v2564 = vpop.f32.mrb[0].mxu0
        %v2565 = vpop.f32.mrb[0].mxu0
        %v2566 = vadd.f32 0.0, %v2565
        %v2567 = vpop.f32.mrb[0].mxu0
        %2568 = vmatprep.mubr.bf16.mxu0 0
        %2569 = vmatmul.mubr.bf16.gmra.mrb[0].mxu0 %v671
        %v2570 = vpop.f32.mrb[0].mxu0
        %v2571 = vadd.f32 0.0, %v2570
        %v2572 = vpop.f32.mrb[0].mxu0
        %v2573 = vpop.f32.mrb[0].mxu0
        %v2574 = vadd.f32 0.0, %v2573
        %v2575 = vpop.f32.mrb[0].mxu0
        %2576 = vmatprep.mubr.bf16.mxu0 0
        %2577 = vmatmul.mubr.bf16.gmra.mrb[0].mxu0 %v683
        %v2578 = vpop.f32.mrb[0].mxu0
        %v2579 = vadd.f32 0.0, %v2578
        %v2580 = vpop.f32.mrb[0].mxu0
        %v2581 = vpop.f32.mrb[0].mxu0
        %v2582 = vadd.f32 0.0, %v2581
        %v2583 = vpop.f32.mrb[0].mxu0
        %2584 = vmatprep.mubr.bf16.mxu0 0
        %2585 = vmatmul.mubr.bf16.gmra.mrb[0].mxu0 %v695
        %v2586 = vpop.f32.mrb[0].mxu0
        %v2587 = vadd.f32 0.0, %v2586
        %v2588 = vpop.f32.mrb[0].mxu0
        %v2589 = vpop.f32.mrb[0].mxu0
        %v2590 = vadd.f32 0.0, %v2589
        %v2591 = vpop.f32.mrb[0].mxu0
        %2592 = vmatprep.mubr.bf16.mxu0 0
        %2593 = vmatmul.mubr.bf16.gmra.mrb[0].mxu0 %v707
        %v2594 = vpop.f32.mrb[0].mxu0
        %v2595 = vadd.f32 0.0, %v2594
        %v2596 = vpop.f32.mrb[0].mxu0
        %v2597 = vpop.f32.mrb[0].mxu0
        %v2598 = vadd.f32 0.0, %v2597
        %v2599 = vpop.f32.mrb[0].mxu0
        %2600 = vmatprep.mubr.bf16.mxu0 0
        %2601 = vmatmul.mubr.bf16.gmra.mrb[0].mxu0 %v719
        %v2602 = vpop.f32.mrb[0].mxu0
        %v2603 = vadd.f32 0.0, %v2602
        %v2604 = vpop.f32.mrb[0].mxu0
        %v2605 = vpop.f32.mrb[0].mxu0
        %v2606 = vadd.f32 0.0, %v2605
        %v2607 = vpop.f32.mrb[0].mxu0
        %2608 = vmatprep.mubr.bf16.mxu0 0
        %2609 = vmatmul.mubr.bf16.gmra.mrb[0].mxu0 %v731
        %v2610 = vpop.f32.mrb[0].mxu0
        %v2611 = vadd.f32 0.0, %v2610
        %v2612 = vpop.f32.mrb[0].mxu0
        %v2613 = vpop.f32.mrb[0].mxu0
        %v2614 = vadd.f32 0.0, %v2613
        %v2615 = vpop.f32.mrb[0].mxu0
        %2616 = vmatprep.mubr.bf16.mxu0 0
        %2617 = vmatmul.mubr.bf16.gmra.mrb[0].mxu0 %v743
        %v2618 = vpop.f32.mrb[0].mxu0
        %v2619 = vadd.f32 0.0, %v2618
        %v2620 = vpop.f32.mrb[0].mxu0
        %v2621 = vpop.f32.mrb[0].mxu0
        %v2622 = vadd.f32 0.0, %v2621
        %v2623 = vpop.f32.mrb[0].mxu0
        %2624 = vmatprep.mubr.bf16.mxu0 0
        %2625 = vmatmul.mubr.bf16.gmra.mrb[0].mxu0 %v755
        %v2626 = vpop.f32.mrb[0].mxu0
        %v2627 = vadd.f32 0.0, %v2626
        %v2628 = vpop.f32.mrb[0].mxu0
        %v2629 = vpop.f32.mrb[0].mxu0
        %v2630 = vadd.f32 0.0, %v2629
        %v2631 = vpop.f32.mrb[0].mxu0
        %2632 = vmatprep.mubr.bf16.mxu0 0
        %2633 = vmatmul.mubr.bf16.gmra.mrb[0].mxu0 %v767
        %v2634 = vpop.f32.mrb[0].mxu0
        %v2635 = vadd.f32 0.0, %v2634
        %v2636 = vpop.f32.mrb[0].mxu0
        %v2637 = vpop.f32.mrb[0].mxu0
        %v2638 = vadd.f32 0.0, %v2637
        %v2639 = vpop.f32.mrb[0].mxu0
        %2640 = vmatprep.mubr.bf16.mxu0 0
        %2641 = vmatmul.mubr.bf16.gmra.mrb[0].mxu0 %v779
        %v2642 = vpop.f32.mrb[0].mxu0
        %v2643 = vadd.f32 0.0, %v2642
        %v2644 = vpop.f32.mrb[0].mxu0
        %v2645 = vpop.f32.mrb[0].mxu0
        %v2646 = vadd.f32 0.0, %v2645
        %v2647 = vpop.f32.mrb[0].mxu0
        %2648 = vmatprep.mubr.bf16.mxu0 0
        %2649 = vmatmul.mubr.bf16.gmra.mrb[0].mxu0 %v881
        %v2650 = vpop.f32.mrb[0].mxu0
        %v2651 = vadd.f32 0.0, %v2650
        %v2652 = vpop.f32.mrb[0].mxu0
        %v2653 = vpop.f32.mrb[0].mxu0
        %v2654 = vadd.f32 0.0, %v2653
        %v2655 = vpop.f32.mrb[0].mxu0
        %2656 = vdwg.mxu0
        %2657 = vst [vmem:[%s339] sm:$0xff] %v2531
        %2658 = vst [vmem:[%s339 + $0x8] sm:$0xff] %v2534
        %2659 = vst [vmem:[%s339 + $0x10] sm:$0xff] %v2539
        %2660 = vst [vmem:[%s339 + $0x18] sm:$0xff] %v2542
        %2661 = vst [vmem:[%s339 + $0x20] sm:$0xff] %v2547
        %2662 = vst [vmem:[%s339 + $0x28] sm:$0xff] %v2550
        %2663 = vst [vmem:[%s339 + $0x30] sm:$0xff] %v2555
        %2664 = vst [vmem:[%s339 + $0x38] sm:$0xff] %v2558
        %2665 = vst [vmem:[%s339 + $0x40] sm:$0xff] %v2563
        %2666 = vst [vmem:[%s339 + $0x48] sm:$0xff] %v2566
        %2667 = vst [vmem:[%s339 + $0x50] sm:$0xff] %v2571
        %2668 = vst [vmem:[%s339 + $0x58] sm:$0xff] %v2574
        %2669 = vst [vmem:[%s339 + $0x60] sm:$0xff] %v2579
        %2670 = vst [vmem:[%s339 + $0x68] sm:$0xff] %v2582
        %2671 = vst [vmem:[%s339 + $0x70] sm:$0xff] %v2587
        %2672 = vst [vmem:[%s339 + $0x78] sm:$0xff] %v2590
        %2673 = vst [vmem:[%s339 + $0x80] sm:$0xff] %v2595
        %2674 = vst [vmem:[%s339 + $0x88] sm:$0xff] %v2598
        %2675 = vst [vmem:[%s339 + $0x90] sm:$0xff] %v2603
        %2676 = vst [vmem:[%s339 + $0x98] sm:$0xff] %v2606
        %2677 = vst [vmem:[%s339 + $0xa0] sm:$0xff] %v2611
        %2678 = vst [vmem:[%s339 + $0xa8] sm:$0xff] %v2614
        %2679 = vst [vmem:[%s339 + $0xb0] sm:$0xff] %v2619
        %2680 = vst [vmem:[%s339 + $0xb8] sm:$0xff] %v2622
        %2681 = vst [vmem:[%s339 + $0xc0] sm:$0xff] %v2627
        %2682 = vst [vmem:[%s339 + $0xc8] sm:$0xff] %v2630
        %2683 = vst [vmem:[%s339 + $0xd0] sm:$0xff] %v2635
        %2684 = vst [vmem:[%s339 + $0xd8] sm:$0xff] %v2638
        %2685 = vst [vmem:[%s339 + $0xe0] sm:$0xff] %v2643
        %2686 = vst [vmem:[%s339 + $0xe8] sm:$0xff] %v2646
        %2687 = vst [vmem:[%s339 + $0xf0] sm:$0xff] %v2651
        %2688 = vst [vmem:[%s339 + $0xf8] sm:$0xff] %v2654
        %v2689 = vadd.f32 %v2531, %v2534
        %v2690 = vadd.f32 %v2689, %v2539
        %v2691 = vadd.f32 %v2690, %v2542
        %v2692 = vadd.f32 %v2691, %v2547
        %v2693 = vadd.f32 %v2692, %v2550
        %v2694 = vadd.f32 %v2693, %v2555
        %v2695 = vadd.f32 %v2694, %v2558
        %v2696 = vadd.f32 %v2695, %v2563
        %v2697 = vadd.f32 %v2696, %v2566
        %v2698 = vadd.f32 %v2697, %v2571
        %v2699 = vadd.f32 %v2698, %v2574
        %v2700 = vadd.f32 %v2699, %v2579
        %v2701 = vadd.f32 %v2700, %v2582
        %v2702 = vadd.f32 %v2701, %v2587
        %v2703 = vadd.f32 %v2702, %v2590
        %v2704 = vadd.f32 %v2703, %v2595
        %v2705 = vadd.f32 %v2704, %v2598
        %v2706 = vadd.f32 %v2705, %v2603
        %v2707 = vadd.f32 %v2706, %v2606
        %v2708 = vadd.f32 %v2707, %v2611
        %v2709 = vadd.f32 %v2708, %v2614
        %v2710 = vadd.f32 %v2709, %v2619
        %v2711 = vadd.f32 %v2710, %v2622
        %v2712 = vadd.f32 %v2711, %v2627
        %v2713 = vadd.f32 %v2712, %v2630
        %v2714 = vadd.f32 %v2713, %v2635
        %v2715 = vadd.f32 %v2714, %v2638
        %v2716 = vadd.f32 %v2715, %v2643
        %v2717 = vadd.f32 %v2716, %v2646
        %v2718 = vadd.f32 %v2717, %v2651
        %v2719 = vadd.f32 %v2718, %v2654
        %v2720 = vrot.slane %v2719, 4
        %v2721 = vadd.f32 %v2719, %v2720
        %v2722 = vrot.slane %v2721, 2
        %v2723 = vadd.f32 %v2721, %v2722
        %v2724 = vrot.slane %v2723, 1
        %v2725 = vadd.f32 %v2723, %v2724
        %v2726 = vmul.f32 %v2531, %v2531
        %v2727 = vmul.f32 %v2534, %v2534
        %v2728 = vmul.f32 %v2539, %v2539
        %v2729 = vmul.f32 %v2542, %v2542
        %v2730 = vmul.f32 %v2547, %v2547
        %v2731 = vmul.f32 %v2550, %v2550
        %v2732 = vmul.f32 %v2555, %v2555
        %v2733 = vmul.f32 %v2558, %v2558
        %v2734 = vmul.f32 %v2563, %v2563
        %v2735 = vmul.f32 %v2566, %v2566
        %v2736 = vmul.f32 %v2571, %v2571
        %v2737 = vmul.f32 %v2574, %v2574
        %v2738 = vmul.f32 %v2579, %v2579
        %v2739 = vmul.f32 %v2582, %v2582
        %v2740 = vmul.f32 %v2587, %v2587
        %v2741 = vmul.f32 %v2590, %v2590
        %v2742 = vmul.f32 %v2595, %v2595
        %v2743 = vmul.f32 %v2598, %v2598
        %v2744 = vmul.f32 %v2603, %v2603
        %v2745 = vmul.f32 %v2606, %v2606
        %v2746 = vmul.f32 %v2611, %v2611
        %v2747 = vmul.f32 %v2614, %v2614
        %v2748 = vmul.f32 %v2619, %v2619
        %v2749 = vmul.f32 %v2622, %v2622
        %v2750 = vmul.f32 %v2627, %v2627
        %v2751 = vmul.f32 %v2630, %v2630
        %v2752 = vmul.f32 %v2635, %v2635
        %v2753 = vmul.f32 %v2638, %v2638
        %v2754 = vmul.f32 %v2643, %v2643
        %v2755 = vmul.f32 %v2646, %v2646
        %v2756 = vmul.f32 %v2651, %v2651
        %v2757 = vmul.f32 %v2654, %v2654
        %v2758 = vadd.f32 %v2726, %v2727
        %v2759 = vadd.f32 %v2758, %v2728
        %v2760 = vadd.f32 %v2759, %v2729
        %v2761 = vadd.f32 %v2760, %v2730
        %v2762 = vadd.f32 %v2761, %v2731
        %v2763 = vadd.f32 %v2762, %v2732
        %v2764 = vadd.f32 %v2763, %v2733
        %v2765 = vadd.f32 %v2764, %v2734
        %v2766 = vadd.f32 %v2765, %v2735
        %v2767 = vadd.f32 %v2766, %v2736
        %v2768 = vadd.f32 %v2767, %v2737
        %v2769 = vadd.f32 %v2768, %v2738
        %v2770 = vadd.f32 %v2769, %v2739
        %v2771 = vadd.f32 %v2770, %v2740
        %v2772 = vadd.f32 %v2771, %v2741
        %v2773 = vadd.f32 %v2772, %v2742
        %v2774 = vadd.f32 %v2773, %v2743
        %v2775 = vadd.f32 %v2774, %v2744
        %v2776 = vadd.f32 %v2775, %v2745
        %v2777 = vadd.f32 %v2776, %v2746
        %v2778 = vadd.f32 %v2777, %v2747
        %v2779 = vadd.f32 %v2778, %v2748
        %v2780 = vadd.f32 %v2779, %v2749
        %v2781 = vadd.f32 %v2780, %v2750
        %v2782 = vadd.f32 %v2781, %v2751
        %v2783 = vadd.f32 %v2782, %v2752
        %v2784 = vadd.f32 %v2783, %v2753
        %v2785 = vadd.f32 %v2784, %v2754
        %v2786 = vadd.f32 %v2785, %v2755
        %v2787 = vadd.f32 %v2786, %v2756
        %v2788 = vadd.f32 %v2787, %v2757
        %v2789 = vrot.slane %v2788, 4
        %v2790 = vadd.f32 %v2788, %v2789
        %v2791 = vrot.slane %v2790, 2
        %v2792 = vadd.f32 %v2790, %v2791
        %v2793 = vrot.slane %v2792, 1
        %v2794 = vadd.f32 %v2792, %v2793
        %2795 = vst [vmem:[%s346] sm:$0x1] %v2362
        %2796 = vst [vmem:[%s346 + $0x1] sm:$0x1] %v2431
        %2797 = vst [vmem:[%s346 + $0x2] sm:$0x1] %v2725
        %2798 = vst [vmem:[%s346 + $0x3] sm:$0x1] %v2794
        %s2799 = sand.u32 %s148, 1
        %s2800 = scalar_lea.sflag [#allocation3], %s2799
        %s2801 = sand.u32 %s148, 1
        %s2802 = smul.addr %s2801, 256
        %s2803 = scalar_lea.vmem [#allocation2], %s2802
        %s2804 = sand.u32 %s24, 1
        %s2805 = scalar_lea.sflag [#allocation5], %s2804
        %s2806 = sand.u32 %s176, 1
        %s2807 = smul.addr %s2806, 256
        %s2808 = scalar_lea.vmem [#allocation4], %s2807
        %s2809 = sand.u32 %s24, 1
        %s2810 = scalar_lea.sflag [#allocation5], %s2809
        %s2811 = sand.u32 %s204, 1
        %s2812 = smul.addr %s2811, 4
        %s2813 = scalar_lea.vmem [#allocation6], %s2812
        // Predicated region
        $region37: #{tpu_custom_call.1} parent=35 // pred_check
          %p2814 = pneg %p158
        $region38: #{tpu_custom_call.1} parent=35 // pred_check_branch
          %2816 = sbr.rel (%p2814) target = $region40
        $region39: #{tpu_custom_call.1} parent=35 // pred_region
          %s2817 = sadd.s32 %s28, %s29
          %s2818 = smul.u32 32, %s2817
          %s2820 = ssub.s32 4096, 4096
          %2821 = vsyncadd %s2800, %s2820
          %s2822 = smul.addr %s2818, 128
          %s2823 = scalar_lea.hbm %s4, %s2822
          %s2824 = sshll.u32 %s2803, 4
          %s2825 = int_to_ptr.vmem [resolvable:$true] %s2824
          %2830 = dma.vmem_to_hbm [thread:$0]  %s2825, 4096, %s2823, %s2800, 128, 128, 8
        $region40: #{tpu_custom_call.1} parent=35 // pred_fallthru
          _
        // Predicated region
        $region41: #{tpu_custom_call.1} parent=35 // pred_check
          %p2831 = pneg %p186
        $region42: #{tpu_custom_call.1} parent=35 // pred_check_branch
          %2833 = sbr.rel (%p2831) target = $region44
        $region43: #{tpu_custom_call.1} parent=35 // pred_region
          %s2834 = sadd.s32 %s28, %s29
          %s2835 = smul.u32 32, %s2834
          %s2837 = ssub.s32 4096, 4096
          %2838 = vsyncadd %s2805, %s2837
          %s2839 = smul.addr %s2835, 128
          %s2840 = scalar_lea.hbm %s5, %s2839
          %s2841 = sshll.u32 %s2808, 4
          %s2842 = int_to_ptr.vmem [resolvable:$true] %s2841
          %2847 = dma.vmem_to_hbm [thread:$0]  %s2842, 4096, %s2840, %s2805, 128, 128, 8
        $region44: #{tpu_custom_call.1} parent=35 // pred_fallthru
          _
        // Predicated region
        $region45: #{tpu_custom_call.1} parent=35 // pred_check
          %p2848 = pneg %p214
        $region46: #{tpu_custom_call.1} parent=35 // pred_check_branch
          %2850 = sbr.rel (%p2848) target = $region48
        $region47: #{tpu_custom_call.1} parent=35 // pred_region
          %s2851 = sadd.s32 %s28, %s29
          %s2853 = ssub.s32 64, 64
          %2854 = vsyncadd %s2810, %s2853
          %s2855 = smul.addr %s2851, 64
          %s2856 = scalar_lea.hbm %s6, %s2855
          %s2858 = sshll.u32 %s2813, 4
          %s2859 = int_to_ptr.vmem [resolvable:$true] %s2858
          %2861 = dma.vmem_to_hbm [thread:$0]  %s2859, 64, %s2856, %s2810
        $region48: #{tpu_custom_call.1} parent=35 // pred_fallthru
          _
      $region36: #{tpu_custom_call.1} parent=5 // pred_fallthru
        _
      %p2862 = scmp.le.s32.totalorder 2, %s19
      // Predicated region
      $region49: #{tpu_custom_call.1} parent=5 // pred_check
        %p2863 = pneg %p2862
      $region50: #{tpu_custom_call.1} parent=5 // pred_check_branch
        %2865 = sbr.rel (%p2863) target = $region52
      $region51: #{tpu_custom_call.1} parent=5 // pred_region
        %s2866 = ssub.s32 %s19, 2
        // Predicated region
        $region53: #{tpu_custom_call.1} parent=51 // pred_check
          %p2867 = pneg %p164
        $region54: #{tpu_custom_call.1} parent=51 // pred_check_branch
          %2869 = sbr.rel (%p2867) target = $region56
        $region55: #{tpu_custom_call.1} parent=51 // pred_region
          %s2870 = sand.u32 %s149, 1
          %s2871 = scalar_lea.sflag [#allocation3], %s2870
          %s2872 = sand.u32 %s149, 1
          %s2873 = smul.addr %s2872, 256
          %s2874 = scalar_lea.vmem [#allocation2], %s2873
          %2875 = dma.done %s2871, 4096
        $region56: #{tpu_custom_call.1} parent=51 // pred_fallthru
          _
        // Predicated region
        $region57: #{tpu_custom_call.1} parent=51 // pred_check
          %p2876 = pneg %p192
        $region58: #{tpu_custom_call.1} parent=51 // pred_check_branch
          %2878 = sbr.rel (%p2876) target = $region60
        $region59: #{tpu_custom_call.1} parent=51 // pred_region
          %s2879 = sand.u32 %s25, 1
          %s2880 = scalar_lea.sflag [#allocation5], %s2879
          %s2881 = sand.u32 %s177, 1
          %s2882 = smul.addr %s2881, 256
          %s2883 = scalar_lea.vmem [#allocation4], %s2882
          %2884 = dma.done %s2880, 4096
        $region60: #{tpu_custom_call.1} parent=51 // pred_fallthru
          _
        // Predicated region
        $region61: #{tpu_custom_call.1} parent=51 // pred_check
          %p2885 = pneg %p220
        $region62: #{tpu_custom_call.1} parent=51 // pred_check_branch
          %2887 = sbr.rel (%p2885) target = $region64
        $region63: #{tpu_custom_call.1} parent=51 // pred_region
          %s2888 = sand.u32 %s25, 1
          %s2889 = scalar_lea.sflag [#allocation5], %s2888
          %s2890 = sand.u32 %s205, 1
          %s2891 = smul.addr %s2890, 4
          %s2892 = scalar_lea.vmem [#allocation6], %s2891
          %2893 = dma.done %s2889, 64
        $region64: #{tpu_custom_call.1} parent=51 // pred_fallthru
          _
      $region52: #{tpu_custom_call.1} parent=5 // pred_fallthru
        _
    $region6: #{tpu_custom_call.1} parent=1 // loop_footer
      %s23 = sadd.s32 1, %s19
    $region7: #{tpu_custom_call.1} parent=1 // loop_footer_branch
      %18 = sbr.rel target = $region3
    $region8: #{tpu_custom_call.1} parent=1 // loop_exit
      _
    %2894 = vsyncpa [#allocation3], 1
    %s2895 = scalar_lea.sflag [#allocation3], 1
    %2896 = vsyncpa %s2895, 1
    %2897 = vsyncpa [#allocation5], 1
    %s2898 = scalar_lea.sflag [#allocation5], 1
    %2899 = vsyncpa %s2898, 1

</llo_original>
